<compile_context>
chip_gen: v5e
topology: v5e:2x2
jax: 0.10.0
libtpu: 0.0.40
codegen_flags: <defaults>
</compile_context>

<pallas_src>
import functools
import math

import jax
import jax.numpy as jnp
import numpy as np
from jax.experimental import pallas as pl
from jax.experimental.pallas import tpu as pltpu


# ------------------------------- Pallas kernels -------------------------------


def _sa_core(x, qk_in, w_qk_ref, b_qk_ref, w_ref, b_ref, ln_ref, o_ref, num_heads, scale):
    """Fused SA block body (operates on one batch element, f32 activations).

    x       : (S, E) f32      layer input (residual stream)
    qk_in   : (S, E) f32      x + pos (or x when pos is None)
    w_qk_ref: (E, 2E) bf16    [Wq | Wk] fused
    b_qk_ref: (1, 2E) f32     [bq | bk]
    w_ref   : (4, E, E) bf16  [Wv, Wmerge, Wffn1, Wffn2]   (in, out) orientation
    b_ref   : (4, E) f32      matching biases
    ln_ref  : (4, E) f32      [ln1_gamma, ln1_beta, ln2_gamma, ln2_beta]
    o_ref   : (S, E) f32      layer output
    """
    E = x.shape[-1]
    b_all = b_ref[...]                 # (4, E)
    ln_all = ln_ref[...]               # (4, E)

    def linear(inp, idx):              # bf16 MXU matmul, f32 accumulate, f32 bias
        y = jnp.dot(inp.astype(jnp.bfloat16), w_ref[idx],
                    preferred_element_type=jnp.float32)
        return y + b_all[idx:idx + 1, :]

    def layer_norm(y, g_row, b_row):   # f32, eps=1e-5 (PyTorch default), biased variance
        mu = jnp.mean(y, axis=-1, keepdims=True)
        d = y - mu
        var = jnp.mean(d * d, axis=-1, keepdims=True)
        return (d * jax.lax.rsqrt(var + 1e-5) * ln_all[g_row:g_row + 1, :]
                + ln_all[b_row:b_row + 1, :])

    # ---- Q/K projection fused into one MXU matmul; V projection separate (different input) ----
    qk = jnp.dot(qk_in.astype(jnp.bfloat16), w_qk_ref[...],
                 preferred_element_type=jnp.float32) + b_qk_ref[...]
    q = qk[:, :E]
    k = qk[:, E:]
    v = linear(x, 0)

    # ---- multi-head attention (heads unrolled statically; module default multi_head=1) ----
    hd = E // num_heads
    head_outs = []
    for h in range(num_heads):
        qh = q[:, h * hd:(h + 1) * hd].astype(jnp.bfloat16)
        kh = k[:, h * hd:(h + 1) * hd].astype(jnp.bfloat16)
        vh = v[:, h * hd:(h + 1) * hd].astype(jnp.bfloat16)
        # scores = (q @ k^T) / sqrt(hd): contract feature axis of both operands (no transpose op)
        s = jax.lax.dot_general(qh, kh, (((1,), (1,)), ((), ())),
                                preferred_element_type=jnp.float32) * scale
        s = s - jnp.max(s, axis=-1, keepdims=True)
        p = jnp.exp(s)
        p = p / jnp.sum(p, axis=-1, keepdims=True)
        head_outs.append(jnp.dot(p.astype(jnp.bfloat16), vh,
                                 preferred_element_type=jnp.float32))
    att = head_outs[0] if num_heads == 1 else jnp.concatenate(head_outs, axis=-1)
    atted = linear(att, 1)             # linear_merge

    # ---- residual + norm1, FFN (E->E, ReLU, E->E), residual + norm2 (dropouts = identity) ----
    h1 = layer_norm(x + atted, 0, 1)
    f = jnp.maximum(linear(h1, 2), 0.0)
    f2 = linear(f, 3)
    o_ref[...] = layer_norm(h1 + f2, 2, 3)


def _sa_kernel_pos(x_ref, pos_ref, w_qk_ref, b_qk_ref, w_ref, b_ref, ln_ref, o_ref,
                   *, num_heads, scale):
    x = x_ref[...]
    _sa_core(x, x + pos_ref[...], w_qk_ref, b_qk_ref, w_ref, b_ref, ln_ref, o_ref,
             num_heads, scale)


def _sa_kernel_nopos(x_ref, w_qk_ref, b_qk_ref, w_ref, b_ref, ln_ref, o_ref,
                     *, num_heads, scale):
    x = x_ref[...]
    _sa_core(x, x, w_qk_ref, b_qk_ref, w_ref, b_ref, ln_ref, o_ref, num_heads, scale)


# --------------------------------- wrappers -----------------------------------


def _prep_params(params):
    """(w(6,E,E), b(6,E), ln(4,E)) -> fused/bf16 kernel operands."""
    w, b, ln = params
    w_qk = jnp.concatenate([w[0], w[1]], axis=-1).astype(jnp.bfloat16)   # (E, 2E)
    b_qk = jnp.concatenate([b[0], b[1]])[None, :].astype(jnp.float32)    # (1, 2E)
    w_rest = w[2:].astype(jnp.bfloat16)                                  # (4, E, E): v, merge, ffn1, ffn2
    b_rest = b[2:].astype(jnp.float32)                                   # (4, E)
    return w_qk, b_qk, w_rest, b_rest, ln.astype(jnp.float32)


def _sa_layer(x_bse, pos, params, num_heads):
    B, S, E = x_bse.shape
    w_qk, b_qk, w_rest, b_rest, ln = params
    scale = 1.0 / math.sqrt(E // num_heads)

    x_spec = pl.BlockSpec((None, S, E), lambda b: (b, 0, 0))
    out_spec = pl.BlockSpec((None, S, E), lambda b: (b, 0, 0))
    weight_specs = [
        pl.BlockSpec((E, 2 * E), lambda b: (0, 0)),     # fused Wq|Wk  (VMEM-resident)
        pl.BlockSpec((1, 2 * E), lambda b: (0, 0)),     # fused bq|bk
        pl.BlockSpec((4, E, E), lambda b: (0, 0, 0)),   # Wv, Wmerge, Wffn1, Wffn2
        pl.BlockSpec((4, E), lambda b: (0, 0)),         # biases
        pl.BlockSpec((4, E), lambda b: (0, 0)),         # layernorm params
    ]
    out_shape = jax.ShapeDtypeStruct((B, S, E), jnp.float32)
    cp = pltpu.CompilerParams(dimension_semantics=("parallel",))

    if pos is None:
        kernel = functools.partial(_sa_kernel_nopos, num_heads=num_heads, scale=scale)
        return pl.pallas_call(
            kernel, out_shape=out_shape, grid=(B,),
            in_specs=[x_spec] + weight_specs, out_specs=out_spec,
            compiler_params=cp,
        )(x_bse, w_qk, b_qk, w_rest, b_rest, ln)

    if pos.shape[0] == 1:
        pos_spec = pl.BlockSpec((None, S, E), lambda b: (0, 0, 0))   # batch-shared, resident
    else:
        pos_spec = pl.BlockSpec((None, S, E), lambda b: (b, 0, 0))   # per-batch
    kernel = functools.partial(_sa_kernel_pos, num_heads=num_heads, scale=scale)
    return pl.pallas_call(
        kernel, out_shape=out_shape, grid=(B,),
        in_specs=[x_spec, pos_spec] + weight_specs, out_specs=out_spec,
        compiler_params=cp,
    )(x_bse, pos, w_qk, b_qk, w_rest, b_rest, ln)


def transformer_layer_forward(x_bhwe, layer_params, fourier_pos=None, num_heads=1):
    """Mirrors Transformer_Layer.forward (eval mode, pre_normalize=False)."""
    B, H, W, E = x_bhwe.shape
    S = H * W
    x = x_bhwe.reshape(B, S, E).astype(jnp.float32)
    if fourier_pos is None:
        pos = None
    else:
        pos = fourier_pos.astype(jnp.float32).reshape(-1, S, E)   # (1,S,E) or (B,S,E)
        if pos.shape[0] not in (1, B):
            pos = jnp.broadcast_to(pos, (B, S, E))
    prepped = [_prep_params(p) for p in layer_params]
    for params in prepped:
        x = _sa_layer(x, pos, params, num_heads)
    return x.reshape(B, H, W, E)


# -------------------------- parameters / pure-JAX ref --------------------------


def init_sa_params(key, E):
    """nn.Linear default init U(-1/sqrt(in), 1/sqrt(in)); LayerNorm gamma=1, beta=0.
    Weights stored in (in, out) orientation (== transpose of PyTorch's (out, in))."""
    bound = 1.0 / math.sqrt(E)
    ws, bs = [], []
    for _ in range(6):                                 # [q, k, v, merge, ffn1, ffn2]
        key, kw, kb = jax.random.split(key, 3)
        ws.append(jax.random.uniform(kw, (E, E), jnp.float32, -bound, bound))
        bs.append(jax.random.uniform(kb, (E,), jnp.float32, -bound, bound))
    w_stack = jnp.stack(ws)                            # (6, E, E)
    b_stack = jnp.stack(bs)                            # (6, E)
    ln_stack = jnp.stack([jnp.ones((E,), jnp.float32), jnp.zeros((E,), jnp.float32),
                          jnp.ones((E,), jnp.float32), jnp.zeros((E,), jnp.float32)])
    return (w_stack, b_stack, ln_stack), key


def reference_forward(x_bhwe, layer_params, fourier_pos=None, num_heads=1,
                      matmul_dtype=jnp.bfloat16):
    B, H, W, E = x_bhwe.shape
    S = H * W
    hd = E // num_heads
    scale = 1.0 / math.sqrt(hd)
    x = x_bhwe.reshape(B, S, E).astype(jnp.float32)
    pos = (jnp.zeros((B, S, E), jnp.float32) if fourier_pos is None else
           jnp.broadcast_to(fourier_pos.astype(jnp.float32).reshape(-1, S, E), (B, S, E)))

    def lin(inp, w, b):
        y = jnp.einsum("bse,ef->bsf", inp.astype(matmul_dtype), w.astype(matmul_dtype),
                       preferred_element_type=jnp.float32)
        return y + b[None, None, :]

    def layer_norm(y, g, b):
        mu = jnp.mean(y, axis=-1, keepdims=True)
        d = y - mu
        var = jnp.mean(d * d, axis=-1, keepdims=True)
        return d * jax.lax.rsqrt(var + 1e-5) * g + b

    for (w, bias, ln) in layer_params:
        qk_in = x + pos
        q = lin(qk_in, w[0], bias[0]).reshape(B, S, num_heads, hd).transpose(0, 2, 1, 3)
        k = lin(qk_in, w[1], bias[1]).reshape(B, S, num_heads, hd).transpose(0, 2, 1, 3)
        v = lin(x, w[2], bias[2]).reshape(B, S, num_heads, hd).transpose(0, 2, 1, 3)
        s = jnp.einsum("bhqd,bhkd->bhqk", q.astype(matmul_dtype), k.astype(matmul_dtype),
                       preferred_element_type=jnp.float32) * scale
        s = s - jnp.max(s, axis=-1, keepdims=True)
        p = jnp.exp(s)
        p = p / jnp.sum(p, axis=-1, keepdims=True)
        att = jnp.einsum("bhqk,bhkd->bhqd", p.astype(matmul_dtype), v.astype(matmul_dtype),
                         preferred_element_type=jnp.float32)
        att = att.transpose(0, 2, 1, 3).reshape(B, S, E)
        atted = lin(att, w[3], bias[3])
        h1 = layer_norm(x + atted, ln[0], ln[1])
        f = jnp.maximum(lin(h1, w[4], bias[4]), 0.0)
        x = layer_norm(h1 + lin(f, w[5], bias[5]), ln[2], ln[3])
    return x.reshape(B, H, W, E)


# ----------------------------------- main --------------------------------------

if __name__ == "__main__":
    B, H, W = 2, 4, 4
    E = 256           # embedding_size (module default)
    num_heads = 1     # multi_head (module default)
    num_layers = 1    # num_self_attention_layers (module default)

    key = jax.random.PRNGKey(0)
    layer_params = []
    for _ in range(num_layers):
        p, key = init_sa_params(key, E)
        layer_params.append(p)

    key, kx, kp = jax.random.split(key, 3)
    x = jax.random.normal(kx, (B, H, W, E), jnp.float32)
    fourier_pos = jax.random.normal(kp, (B, H, W, E), jnp.float32)

    # per-batch fourier positional embedding
    out = jax.block_until_ready(
        transformer_layer_forward(x, layer_params, fourier_pos, num_heads))
    assert out.shape == (B, H, W, E)
    ref_bf16 = reference_forward(x, layer_params, fourier_pos, num_heads,
                                 matmul_dtype=jnp.bfloat16)
    np.testing.assert_allclose(np.asarray(out), np.asarray(ref_bf16), rtol=2e-3, atol=2e-3)
    ref_f32 = reference_forward(x, layer_params, fourier_pos, num_heads,
                                matmul_dtype=jnp.float32)
    np.testing.assert_allclose(np.asarray(out), np.asarray(ref_f32), rtol=5e-2, atol=5e-2)

    # batch-shared positional embedding (constant index_map path)
    shared_pos = fourier_pos[:1]
    out_sh = jax.block_until_ready(
        transformer_layer_forward(x, layer_params, shared_pos, num_heads))
    ref_sh = reference_forward(x, layer_params, shared_pos, num_heads,
                               matmul_dtype=jnp.bfloat16)
    np.testing.assert_allclose(np.asarray(out_sh), np.asarray(ref_sh), rtol=2e-3, atol=2e-3)

    # fourier_pos = None path (q = k = x, dedicated kernel with no pos operand)
    out_np = jax.block_until_ready(
        transformer_layer_forward(x, layer_params, None, num_heads))
    ref_np = reference_forward(x, layer_params, None, num_heads, matmul_dtype=jnp.bfloat16)
    np.testing.assert_allclose(np.asarray(out_np), np.asarray(ref_np), rtol=2e-3, atol=2e-3)

    print("KERNEL_OK")
</pallas_src>

<mosaic_0001>
module attributes {stable_mosaic.version = 11 : i64} {
  func.func @_sa_kernel_pos(%arg0: i32, %arg1: memref<1x16x256xf32, #tpu.memory_space<vmem>>, %arg2: memref<1x16x256xf32, #tpu.memory_space<vmem>>, %arg3: memref<256x512xbf16, #tpu.memory_space<vmem>>, %arg4: memref<1x512xf32, #tpu.memory_space<vmem>>, %arg5: memref<4x256x256xbf16, #tpu.memory_space<vmem>>, %arg6: memref<4x256xf32, #tpu.memory_space<vmem>>, %arg7: memref<4x256xf32, #tpu.memory_space<vmem>>, %arg8: memref<1x16x256xf32, #tpu.memory_space<vmem>>) attributes {dimension_semantics = [#tpu.dimension_semantics<parallel>], iteration_bounds = array<i64: 2>, scalar_prefetch = 0 : i64, scratch_operands = 0 : i64, tpu.core_type = #tpu.core_type<tc>, window_params = [{transform_indices = @transform_0, window_bounds = array<i64: 1, 16, 256>}, {transform_indices = @transform_1, window_bounds = array<i64: 1, 16, 256>}, {pipeline_mode = #tpu.pipeline_mode<synchronous>, transform_indices = @transform_2, window_bounds = array<i64: 256, 512>}, {pipeline_mode = #tpu.pipeline_mode<synchronous>, transform_indices = @transform_3, window_bounds = array<i64: 1, 512>}, {pipeline_mode = #tpu.pipeline_mode<synchronous>, transform_indices = @transform_4, window_bounds = array<i64: 4, 256, 256>}, {pipeline_mode = #tpu.pipeline_mode<synchronous>, transform_indices = @transform_5, window_bounds = array<i64: 4, 256>}, {pipeline_mode = #tpu.pipeline_mode<synchronous>, transform_indices = @transform_6, window_bounds = array<i64: 4, 256>}, {transform_indices = @transform_7, window_bounds = array<i64: 1, 16, 256>}]} {
    %c0 = arith.constant 0 : index
    %c0_0 = arith.constant 0 : index
    %c0_1 = arith.constant 0 : index
    %0 = vector.load %arg1[%c0, %c0_0, %c0_1] : memref<1x16x256xf32, #tpu.memory_space<vmem>>, vector<1x16x256xf32>
    %1 = vector.shape_cast %0 : vector<1x16x256xf32> to vector<16x256xf32>
    %c0_2 = arith.constant 0 : index
    %c0_3 = arith.constant 0 : index
    %c0_4 = arith.constant 0 : index
    %2 = vector.load %arg2[%c0_2, %c0_3, %c0_4] : memref<1x16x256xf32, #tpu.memory_space<vmem>>, vector<1x16x256xf32>
    %3 = vector.shape_cast %2 : vector<1x16x256xf32> to vector<16x256xf32>
    %4 = arith.addf %1, %3 : vector<16x256xf32>
    %c0_5 = arith.constant 0 : index
    %c0_6 = arith.constant 0 : index
    %5 = vector.load %arg6[%c0_5, %c0_6] : memref<4x256xf32, #tpu.memory_space<vmem>>, vector<4x256xf32>
    %c0_7 = arith.constant 0 : index
    %c0_8 = arith.constant 0 : index
    %6 = vector.load %arg7[%c0_7, %c0_8] : memref<4x256xf32, #tpu.memory_space<vmem>>, vector<4x256xf32>
    %7 = arith.truncf %4 : vector<16x256xf32> to vector<16x256xbf16>
    %c0_9 = arith.constant 0 : index
    %c0_10 = arith.constant 0 : index
    %8 = vector.load %arg3[%c0_9, %c0_10] : memref<256x512xbf16, #tpu.memory_space<vmem>>, vector<256x512xbf16>
    %cst = arith.constant dense<0.000000e+00> : vector<16x512xf32>
    %9 = tpu.matmul %7, %8, %cst {dimension_numbers = #tpu.dot_dimension_numbers<[1], [0], [0], [1], [0, 0, 1, 1], [], []>} : vector<16x256xbf16>, vector<256x512xbf16>, vector<16x512xf32> -> vector<16x512xf32>
    %c0_11 = arith.constant 0 : index
    %c0_12 = arith.constant 0 : index
    %10 = vector.load %arg4[%c0_11, %c0_12] : memref<1x512xf32, #tpu.memory_space<vmem>>, vector<1x512xf32>
    %11 = vector.broadcast %10 : vector<1x512xf32> to vector<16x512xf32>
    %12 = arith.addf %9, %11 : vector<16x512xf32>
    %13 = vector.extract_strided_slice %12 {offsets = [0, 0], sizes = [16, 256], strides = [1, 1]} : vector<16x512xf32> to vector<16x256xf32>
    %14 = vector.extract_strided_slice %12 {offsets = [0, 256], sizes = [16, 256], strides = [1, 1]} : vector<16x512xf32> to vector<16x256xf32>
    %15 = arith.truncf %1 : vector<16x256xf32> to vector<16x256xbf16>
    %c0_13 = arith.constant 0 : index
    %c0_14 = arith.constant 0 : index
    %c0_15 = arith.constant 0 : index
    %16 = vector.load %arg5[%c0_13, %c0_14, %c0_15] : memref<4x256x256xbf16, #tpu.memory_space<vmem>>, vector<1x256x256xbf16>
    %17 = vector.shape_cast %16 : vector<1x256x256xbf16> to vector<256x256xbf16>
    %cst_16 = arith.constant dense<0.000000e+00> : vector<16x256xf32>
    %18 = tpu.matmul %15, %17, %cst_16 {dimension_numbers = #tpu.dot_dimension_numbers<[1], [0], [0], [1], [0, 0, 1, 1], [], []>} : vector<16x256xbf16>, vector<256x256xbf16>, vector<16x256xf32> -> vector<16x256xf32>
    %19 = vector.extract_strided_slice %5 {offsets = [0, 0], sizes = [1, 256], strides = [1, 1]} : vector<4x256xf32> to vector<1x256xf32>
    %20 = vector.broadcast %19 : vector<1x256xf32> to vector<16x256xf32>
    %21 = arith.addf %18, %20 : vector<16x256xf32>
    %22 = arith.truncf %13 : vector<16x256xf32> to vector<16x256xbf16>
    %23 = arith.truncf %14 : vector<16x256xf32> to vector<16x256xbf16>
    %24 = arith.truncf %21 : vector<16x256xf32> to vector<16x256xbf16>
    %cst_17 = arith.constant dense<0.000000e+00> : vector<16x16xf32>
    %25 = tpu.matmul %22, %23, %cst_17 {dimension_numbers = #tpu.dot_dimension_numbers<[1], [1], [0], [0], [0, 0, 1, 0], [], []>} : vector<16x256xbf16>, vector<16x256xbf16>, vector<16x16xf32> -> vector<16x16xf32>
    %cst_18 = arith.constant 6.250000e-02 : f32
    %26 = vector.broadcast %cst_18 : f32 to vector<16x16xf32>
    %27 = arith.mulf %25, %26 : vector<16x16xf32>
    %cst_19 = arith.constant dense<0xFF800000> : vector<16xf32>
    %28 = vector.multi_reduction <maximumf>, %27, %cst_19 [1] : vector<16x16xf32> to vector<16xf32>
    %29 = vector.shape_cast %28 : vector<16xf32> to vector<16x1xf32>
    %30 = vector.broadcast %29 : vector<16x1xf32> to vector<16x16xf32>
    %31 = arith.subf %27, %30 : vector<16x16xf32>
    %32 = math.exp %31 : vector<16x16xf32>
    %cst_20 = arith.constant dense<0.000000e+00> : vector<16xf32>
    %33 = vector.multi_reduction <add>, %32, %cst_20 [1] : vector<16x16xf32> to vector<16xf32>
    %34 = vector.shape_cast %33 : vector<16xf32> to vector<16x1xf32>
    %35 = vector.broadcast %34 : vector<16x1xf32> to vector<16x16xf32>
    %36 = arith.divf %32, %35 : vector<16x16xf32>
    %37 = arith.truncf %36 : vector<16x16xf32> to vector<16x16xbf16>
    %cst_21 = arith.constant dense<0.000000e+00> : vector<16x256xf32>
    %38 = tpu.matmul %37, %24, %cst_21 {dimension_numbers = #tpu.dot_dimension_numbers<[1], [0], [0], [1], [0, 0, 1, 1], [], []>} : vector<16x16xbf16>, vector<16x256xbf16>, vector<16x256xf32> -> vector<16x256xf32>
    %39 = arith.truncf %38 : vector<16x256xf32> to vector<16x256xbf16>
    %c1 = arith.constant 1 : index
    %c0_22 = arith.constant 0 : index
    %c0_23 = arith.constant 0 : index
    %40 = vector.load %arg5[%c1, %c0_22, %c0_23] : memref<4x256x256xbf16, #tpu.memory_space<vmem>>, vector<1x256x256xbf16>
    %41 = vector.shape_cast %40 : vector<1x256x256xbf16> to vector<256x256xbf16>
    %cst_24 = arith.constant dense<0.000000e+00> : vector<16x256xf32>
    %42 = tpu.matmul %39, %41, %cst_24 {dimension_numbers = #tpu.dot_dimension_numbers<[1], [0], [0], [1], [0, 0, 1, 1], [], []>} : vector<16x256xbf16>, vector<256x256xbf16>, vector<16x256xf32> -> vector<16x256xf32>
    %43 = vector.extract_strided_slice %5 {offsets = [1, 0], sizes = [1, 256], strides = [1, 1]} : vector<4x256xf32> to vector<1x256xf32>
    %44 = vector.broadcast %43 : vector<1x256xf32> to vector<16x256xf32>
    %45 = arith.addf %42, %44 : vector<16x256xf32>
    %46 = arith.addf %1, %45 : vector<16x256xf32>
    %cst_25 = arith.constant dense<0.000000e+00> : vector<16xf32>
    %47 = vector.multi_reduction <add>, %46, %cst_25 [1] : vector<16x256xf32> to vector<16xf32>
    %48 = vector.shape_cast %47 : vector<16xf32> to vector<16x1xf32>
    %cst_26 = arith.constant 2.560000e+02 : f32
    %49 = vector.broadcast %cst_26 : f32 to vector<16x1xf32>
    %50 = arith.divf %48, %49 : vector<16x1xf32>
    %51 = vector.broadcast %50 : vector<16x1xf32> to vector<16x256xf32>
    %52 = arith.subf %46, %51 : vector<16x256xf32>
    %53 = arith.mulf %52, %52 : vector<16x256xf32>
    %cst_27 = arith.constant dense<0.000000e+00> : vector<16xf32>
    %54 = vector.multi_reduction <add>, %53, %cst_27 [1] : vector<16x256xf32> to vector<16xf32>
    %55 = vector.shape_cast %54 : vector<16xf32> to vector<16x1xf32>
    %cst_28 = arith.constant 2.560000e+02 : f32
    %56 = vector.broadcast %cst_28 : f32 to vector<16x1xf32>
    %57 = arith.divf %55, %56 : vector<16x1xf32>
    %cst_29 = arith.constant 9.99999974E-6 : f32
    %58 = vector.broadcast %cst_29 : f32 to vector<16x1xf32>
    %59 = arith.addf %57, %58 : vector<16x1xf32>
    %60 = math.rsqrt %59 : vector<16x1xf32>
    %61 = vector.broadcast %60 : vector<16x1xf32> to vector<16x256xf32>
    %62 = arith.mulf %52, %61 : vector<16x256xf32>
    %63 = vector.extract_strided_slice %6 {offsets = [0, 0], sizes = [1, 256], strides = [1, 1]} : vector<4x256xf32> to vector<1x256xf32>
    %64 = vector.broadcast %63 : vector<1x256xf32> to vector<16x256xf32>
    %65 = arith.mulf %62, %64 : vector<16x256xf32>
    %66 = vector.extract_strided_slice %6 {offsets = [1, 0], sizes = [1, 256], strides = [1, 1]} : vector<4x256xf32> to vector<1x256xf32>
    %67 = vector.broadcast %66 : vector<1x256xf32> to vector<16x256xf32>
    %68 = arith.addf %65, %67 : vector<16x256xf32>
    %69 = arith.truncf %68 : vector<16x256xf32> to vector<16x256xbf16>
    %c2 = arith.constant 2 : index
    %c0_30 = arith.constant 0 : index
    %c0_31 = arith.constant 0 : index
    %70 = vector.load %arg5[%c2, %c0_30, %c0_31] : memref<4x256x256xbf16, #tpu.memory_space<vmem>>, vector<1x256x256xbf16>
    %71 = vector.shape_cast %70 : vector<1x256x256xbf16> to vector<256x256xbf16>
    %cst_32 = arith.constant dense<0.000000e+00> : vector<16x256xf32>
    %72 = tpu.matmul %69, %71, %cst_32 {dimension_numbers = #tpu.dot_dimension_numbers<[1], [0], [0], [1], [0, 0, 1, 1], [], []>} : vector<16x256xbf16>, vector<256x256xbf16>, vector<16x256xf32> -> vector<16x256xf32>
    %73 = vector.extract_strided_slice %5 {offsets = [2, 0], sizes = [1, 256], strides = [1, 1]} : vector<4x256xf32> to vector<1x256xf32>
    %74 = vector.broadcast %73 : vector<1x256xf32> to vector<16x256xf32>
    %75 = arith.addf %72, %74 : vector<16x256xf32>
    %cst_33 = arith.constant 0.000000e+00 : f32
    %76 = vector.broadcast %cst_33 : f32 to vector<16x256xf32>
    %77 = arith.maximumf %75, %76 : vector<16x256xf32>
    %78 = arith.truncf %77 : vector<16x256xf32> to vector<16x256xbf16>
    %c3 = arith.constant 3 : index
    %c0_34 = arith.constant 0 : index
    %c0_35 = arith.constant 0 : index
    %79 = vector.load %arg5[%c3, %c0_34, %c0_35] : memref<4x256x256xbf16, #tpu.memory_space<vmem>>, vector<1x256x256xbf16>
    %80 = vector.shape_cast %79 : vector<1x256x256xbf16> to vector<256x256xbf16>
    %cst_36 = arith.constant dense<0.000000e+00> : vector<16x256xf32>
    %81 = tpu.matmul %78, %80, %cst_36 {dimension_numbers = #tpu.dot_dimension_numbers<[1], [0], [0], [1], [0, 0, 1, 1], [], []>} : vector<16x256xbf16>, vector<256x256xbf16>, vector<16x256xf32> -> vector<16x256xf32>
    %82 = vector.extract_strided_slice %5 {offsets = [3, 0], sizes = [1, 256], strides = [1, 1]} : vector<4x256xf32> to vector<1x256xf32>
    %83 = vector.broadcast %82 : vector<1x256xf32> to vector<16x256xf32>
    %84 = arith.addf %81, %83 : vector<16x256xf32>
    %85 = arith.addf %68, %84 : vector<16x256xf32>
    %cst_37 = arith.constant dense<0.000000e+00> : vector<16xf32>
    %86 = vector.multi_reduction <add>, %85, %cst_37 [1] : vector<16x256xf32> to vector<16xf32>
    %87 = vector.shape_cast %86 : vector<16xf32> to vector<16x1xf32>
    %cst_38 = arith.constant 2.560000e+02 : f32
    %88 = vector.broadcast %cst_38 : f32 to vector<16x1xf32>
    %89 = arith.divf %87, %88 : vector<16x1xf32>
    %90 = vector.broadcast %89 : vector<16x1xf32> to vector<16x256xf32>
    %91 = arith.subf %85, %90 : vector<16x256xf32>
    %92 = arith.mulf %91, %91 : vector<16x256xf32>
    %cst_39 = arith.constant dense<0.000000e+00> : vector<16xf32>
    %93 = vector.multi_reduction <add>, %92, %cst_39 [1] : vector<16x256xf32> to vector<16xf32>
    %94 = vector.shape_cast %93 : vector<16xf32> to vector<16x1xf32>
    %cst_40 = arith.constant 2.560000e+02 : f32
    %95 = vector.broadcast %cst_40 : f32 to vector<16x1xf32>
    %96 = arith.divf %94, %95 : vector<16x1xf32>
    %cst_41 = arith.constant 9.99999974E-6 : f32
    %97 = vector.broadcast %cst_41 : f32 to vector<16x1xf32>
    %98 = arith.addf %96, %97 : vector<16x1xf32>
    %99 = math.rsqrt %98 : vector<16x1xf32>
    %100 = vector.broadcast %99 : vector<16x1xf32> to vector<16x256xf32>
    %101 = arith.mulf %91, %100 : vector<16x256xf32>
    %102 = vector.extract_strided_slice %6 {offsets = [2, 0], sizes = [1, 256], strides = [1, 1]} : vector<4x256xf32> to vector<1x256xf32>
    %103 = vector.broadcast %102 : vector<1x256xf32> to vector<16x256xf32>
    %104 = arith.mulf %101, %103 : vector<16x256xf32>
    %105 = vector.extract_strided_slice %6 {offsets = [3, 0], sizes = [1, 256], strides = [1, 1]} : vector<4x256xf32> to vector<1x256xf32>
    %106 = vector.broadcast %105 : vector<1x256xf32> to vector<16x256xf32>
    %107 = arith.addf %104, %106 : vector<16x256xf32>
    %c0_42 = arith.constant 0 : index
    %c0_43 = arith.constant 0 : index
    %c0_44 = arith.constant 0 : index
    %108 = vector.load %arg8[%c0_42, %c0_43, %c0_44] : memref<1x16x256xf32, #tpu.memory_space<vmem>>, vector<1x16x256xf32>
    %109 = vector.shape_cast %108 : vector<1x16x256xf32> to vector<16x256xf32>
    %110 = vector.shape_cast %107 : vector<16x256xf32> to vector<1x16x256xf32>
    tpu.vector_store %arg8[%c0_42, %c0_43, %c0_44], %110 {strides = array<i32>} : memref<1x16x256xf32, #tpu.memory_space<vmem>>, vector<1x16x256xf32>,
    return
  }
  func.func @transform_0(%arg0: i32) -> (i32, i32, i32) {
    %c0_i32 = arith.constant 0 : i32
    %c0_i32_0 = arith.constant 0 : i32
    %c0_i32_1 = arith.constant 0 : i32
    return %arg0, %c0_i32, %c0_i32_0 : i32, i32, i32
  }
  func.func @transform_1(%arg0: i32) -> (i32, i32, i32) {
    %c0_i32 = arith.constant 0 : i32
    %c0_i32_0 = arith.constant 0 : i32
    %c0_i32_1 = arith.constant 0 : i32
    return %arg0, %c0_i32, %c0_i32_0 : i32, i32, i32
  }
  func.func @transform_2(%arg0: i32) -> (i32, i32) {
    %c0_i32 = arith.constant 0 : i32
    %c0_i32_0 = arith.constant 0 : i32
    %c0_i32_1 = arith.constant 0 : i32
    return %c0_i32, %c0_i32_0 : i32, i32
  }
  func.func @transform_3(%arg0: i32) -> (i32, i32) {
    %c0_i32 = arith.constant 0 : i32
    %c0_i32_0 = arith.constant 0 : i32
    %c0_i32_1 = arith.constant 0 : i32
    return %c0_i32, %c0_i32_0 : i32, i32
  }
  func.func @transform_4(%arg0: i32) -> (i32, i32, i32) {
    %c0_i32 = arith.constant 0 : i32
    %c0_i32_0 = arith.constant 0 : i32
    %c0_i32_1 = arith.constant 0 : i32
    %c0_i32_2 = arith.constant 0 : i32
    return %c0_i32, %c0_i32_0, %c0_i32_1 : i32, i32, i32
  }
  func.func @transform_5(%arg0: i32) -> (i32, i32) {
    %c0_i32 = arith.constant 0 : i32
    %c0_i32_0 = arith.constant 0 : i32
    %c0_i32_1 = arith.constant 0 : i32
    return %c0_i32, %c0_i32_0 : i32, i32
  }
  func.func @transform_6(%arg0: i32) -> (i32, i32) {
    %c0_i32 = arith.constant 0 : i32
    %c0_i32_0 = arith.constant 0 : i32
    %c0_i32_1 = arith.constant 0 : i32
    return %c0_i32, %c0_i32_0 : i32, i32
  }
  func.func @transform_7(%arg0: i32) -> (i32, i32, i32) {
    %c0_i32 = arith.constant 0 : i32
    %c0_i32_0 = arith.constant 0 : i32
    %c0_i32_1 = arith.constant 0 : i32
    return %arg0, %c0_i32, %c0_i32_0 : i32, i32, i32
  }
}

</mosaic_0001>

<llo_original>
// kernel: tpu_custom_call.1
$region0: #{tpu_custom_call.1}
  #allocation0 [shape = 'u32[]', space=smem, size = 0x4, offset = 0x4, fixed_abs, tag = 'smem constant byte address 0x4 - core index']
  #allocation1 [shape = 'u32[72,128]{1,0:T(1,128)}', space=vmem, size = 0x9000, scoped, tag = 'internal scratch']
  %s0 = inlined_call_operand.hbm [shape: f32[2,16,256], index: 0, kind: input, shape index: {}]
  %s1 = inlined_call_operand.hbm [shape: f32[2,16,256], index: 1, kind: input, shape index: {}]
  %s2 = inlined_call_operand.hbm [shape: bf16[256,512], index: 2, kind: input, shape index: {}]
  %s3 = inlined_call_operand.hbm [shape: f32[1,512], index: 3, kind: input, shape index: {}]
  %s4 = inlined_call_operand.hbm [shape: bf16[4,256,256], index: 4, kind: input, shape index: {}]
  %s5 = inlined_call_operand.hbm [shape: f32[4,256], index: 5, kind: input, shape index: {}]
  %s6 = inlined_call_operand.hbm [shape: f32[4,256], index: 6, kind: input, shape index: {}]
  %s7 = inlined_call_operand.hbm [shape: f32[2,16,256], index: 7, kind: output, shape index: {}]
  %s8 = sld [smem:[#allocation0]]
  $region89: #{tpu_custom_call.1} parent=0
    _
  %s10 = ssub.s32 1, %s8
  %s11 = scalar_select 0, %s10, %s8
  $region1: #{tpu_custom_call.1} parent=0
    #allocation2 [shape = 'u8[32768]{0}', space=vmem, size = 0x8000, scoped, tag = 'input window, operand 0']
    #allocation3 [shape = 's32[2]{0}', space=sflag, size = 0x8, scoped, tag = 'scoped memory for tpu_custom_call.1']
    #allocation4 [shape = 's32[2]{0}', space=sflag, size = 0x8, scoped, tag = 'scoped memory for tpu_custom_call.1']
    #allocation5 [shape = 'u8[32768]{0}', space=vmem, size = 0x8000, scoped, tag = 'input window, operand 1']
    #allocation6 [shape = 's32[2]{0}', space=sflag, size = 0x8, scoped, tag = 'scoped memory for tpu_custom_call.1']
    #allocation7 [shape = 'u8[262144]{0}', space=vmem, size = 0x40000, scoped, tag = 'input window, operand 2, single buffered']
    #allocation8 [shape = 'u8[2048]{0}', space=vmem, size = 0x800, scoped, tag = 'input window, operand 3, single buffered']
    #allocation9 [shape = 's32[1]{0}', space=sflag, size = 0x4, scoped, tag = 'scoped memory for tpu_custom_call.1']
    #allocation10 [shape = 'u8[524288]{0}', space=vmem, size = 0x80000, scoped, tag = 'input window, operand 4, single buffered']
    #allocation11 [shape = 'u8[4096]{0}', space=vmem, size = 0x1000, scoped, tag = 'input window, operand 5, single buffered']
    #allocation12 [shape = 's32[1]{0}', space=sflag, size = 0x4, scoped, tag = 'scoped memory for tpu_custom_call.1']
    #allocation13 [shape = 'u8[4096]{0}', space=vmem, size = 0x1000, scoped, tag = 'input window, operand 6, single buffered']
    #allocation14 [shape = 'u8[32768]{0}', space=vmem, size = 0x8000, scoped, tag = 'output window, operand 0']
    %12 = vsyncpa [#allocation3], 0
    %s13 = scalar_lea.sflag [#allocation3], 1
    %14 = vsyncpa %s13, 0
    %15 = vsyncpa [#allocation6], 0
    %s16 = scalar_lea.sflag [#allocation6], 1
    %17 = vsyncpa %s16, 0
    %18 = vsyncpa [#allocation9], 0
    %19 = vsyncpa [#allocation12], 0
    %20 = vsyncpa [#allocation4], 0
    %s21 = scalar_lea.sflag [#allocation4], 1
    %22 = vsyncpa %s21, 0
    loop: start=0, step=1, limit=4
    $region2: #{tpu_custom_call.1} parent=1 // loop_pre_header
      _
    $region3: #{tpu_custom_call.1} parent=1 // loop_header
      %s24 = sphi 0, %s28
      %p25 = scmp.ge.s32.totalorder %s24, 4
      %s34 = sphi 0, %s36
      %s37 = sphi 0, %s34
      %s38 = sphi 0, %s37
      %s54 = sphi 0, %s38
      %s60 = sphi 0, %s62
      %s63 = sphi 0, %s60
      %s64 = sphi 0, %s63
      %s80 = sphi 0, %s64
      %s84 = sphi 0, %s84
      %s86 = sphi 0, %s84
      %s87 = sphi 0, %s86
      %s101 = sphi 0, %s87
      %s105 = sphi 0, %s105
      %s107 = sphi 0, %s105
      %s108 = sphi 0, %s107
      %s122 = sphi 0, %s108
      %s126 = sphi 0, %s126
      %s128 = sphi 0, %s126
      %s129 = sphi 0, %s128
      %s143 = sphi 0, %s129
      %s147 = sphi 0, %s147
      %s149 = sphi 0, %s147
      %s150 = sphi 0, %s149
      %s164 = sphi 0, %s150
      %s168 = sphi 0, %s168
      %s170 = sphi 0, %s168
      %s171 = sphi 0, %s170
      %s185 = sphi 0, %s171
      %s191 = sphi 0, %s193
      %s194 = sphi 0, %s191
      %s195 = sphi 0, %s194
      %s211 = sphi 0, %s195
    $region4: #{tpu_custom_call.1} parent=1 // loop_header_branch
      %27 = sbr.rel (%p25) target = $region8
    $region5: #{tpu_custom_call.1} parent=1 // loop_body
      %s29 = ssub.s32 %s24, 1
      %s30 = ssub.s32 %s24, 2
      %s31 = sadd.s32 %s24, 1
      %s32 = ssub.s32 %s24, %s31
      %p33 = scmp.eq.s32.totalorder %s32, 0
      %s35 = sadd.s32 %s34, 1
      %s36 = scalar_select %p33, %s34, %s35
      %p39 = pneg %p33
      %p40 = scmp.eq.s32.totalorder %s24, 1
      %p41 = por %p39, %p40
      %p42 = scmp.ne.s32.totalorder %s34, %s37
      %p43 = scmp.eq.s32.totalorder %s24, 0
      %p44 = por %p42, %p43
      %p45 = scmp.ne.s32.totalorder %s34, %s37
      %p46 = scmp.eq.s32.totalorder %s29, 1
      %p47 = por %p45, %p46
      %p48 = scmp.ne.s32.totalorder %s37, %s38
      %p49 = scmp.eq.s32.totalorder %s29, 0
      %p50 = por %p48, %p49
      %p51 = scmp.ne.s32.totalorder %s37, %s38
      %p52 = scmp.eq.s32.totalorder %s30, 1
      %p53 = por %p51, %p52
      %p55 = scmp.ne.s32.totalorder %s38, %s54
      %p56 = scmp.eq.s32.totalorder %s30, 0
      %p57 = por %p55, %p56
      %s58 = ssub.s32 %s24, %s31
      %p59 = scmp.eq.s32.totalorder %s58, 0
      %s61 = sadd.s32 %s60, 1
      %s62 = scalar_select %p59, %s60, %s61
      %p65 = pneg %p59
      %p66 = scmp.eq.s32.totalorder %s24, 1
      %p67 = por %p65, %p66
      %p68 = scmp.ne.s32.totalorder %s60, %s63
      %p69 = scmp.eq.s32.totalorder %s24, 0
      %p70 = por %p68, %p69
      %p71 = scmp.ne.s32.totalorder %s60, %s63
      %p72 = scmp.eq.s32.totalorder %s29, 1
      %p73 = por %p71, %p72
      %p74 = scmp.ne.s32.totalorder %s63, %s64
      %p75 = scmp.eq.s32.totalorder %s29, 0
      %p76 = por %p74, %p75
      %p77 = scmp.ne.s32.totalorder %s63, %s64
      %p78 = scmp.eq.s32.totalorder %s30, 1
      %p79 = por %p77, %p78
      %p81 = scmp.ne.s32.totalorder %s64, %s80
      %p82 = scmp.eq.s32.totalorder %s30, 0
      %p83 = por %p81, %p82
      %s85 = sadd.s32 %s84, 1
      %p88 = scmp.eq.s32.totalorder %s24, 1
      %p89 = scmp.ne.s32.totalorder %s84, %s86
      %p90 = scmp.eq.s32.totalorder %s24, 0
      %p91 = por %p89, %p90
      %p92 = scmp.ne.s32.totalorder %s84, %s86
      %p93 = scmp.eq.s32.totalorder %s29, 1
      %p94 = por %p92, %p93
      %p95 = scmp.ne.s32.totalorder %s86, %s87
      %p96 = scmp.eq.s32.totalorder %s29, 0
      %p97 = por %p95, %p96
      %p98 = scmp.ne.s32.totalorder %s86, %s87
      %p99 = scmp.eq.s32.totalorder %s30, 1
      %p100 = por %p98, %p99
      %p102 = scmp.ne.s32.totalorder %s87, %s101
      %p103 = scmp.eq.s32.totalorder %s30, 0
      %p104 = por %p102, %p103
      %s106 = sadd.s32 %s105, 1
      %p109 = scmp.eq.s32.totalorder %s24, 1
      %p110 = scmp.ne.s32.totalorder %s105, %s107
      %p111 = scmp.eq.s32.totalorder %s24, 0
      %p112 = por %p110, %p111
      %p113 = scmp.ne.s32.totalorder %s105, %s107
      %p114 = scmp.eq.s32.totalorder %s29, 1
      %p115 = por %p113, %p114
      %p116 = scmp.ne.s32.totalorder %s107, %s108
      %p117 = scmp.eq.s32.totalorder %s29, 0
      %p118 = por %p116, %p117
      %p119 = scmp.ne.s32.totalorder %s107, %s108
      %p120 = scmp.eq.s32.totalorder %s30, 1
      %p121 = por %p119, %p120
      %p123 = scmp.ne.s32.totalorder %s108, %s122
      %p124 = scmp.eq.s32.totalorder %s30, 0
      %p125 = por %p123, %p124
      %s127 = sadd.s32 %s126, 1
      %p130 = scmp.eq.s32.totalorder %s24, 1
      %p131 = scmp.ne.s32.totalorder %s126, %s128
      %p132 = scmp.eq.s32.totalorder %s24, 0
      %p133 = por %p131, %p132
      %p134 = scmp.ne.s32.totalorder %s126, %s128
      %p135 = scmp.eq.s32.totalorder %s29, 1
      %p136 = por %p134, %p135
      %p137 = scmp.ne.s32.totalorder %s128, %s129
      %p138 = scmp.eq.s32.totalorder %s29, 0
      %p139 = por %p137, %p138
      %p140 = scmp.ne.s32.totalorder %s128, %s129
      %p141 = scmp.eq.s32.totalorder %s30, 1
      %p142 = por %p140, %p141
      %p144 = scmp.ne.s32.totalorder %s129, %s143
      %p145 = scmp.eq.s32.totalorder %s30, 0
      %p146 = por %p144, %p145
      %s148 = sadd.s32 %s147, 1
      %p151 = scmp.eq.s32.totalorder %s24, 1
      %p152 = scmp.ne.s32.totalorder %s147, %s149
      %p153 = scmp.eq.s32.totalorder %s24, 0
      %p154 = por %p152, %p153
      %p155 = scmp.ne.s32.totalorder %s147, %s149
      %p156 = scmp.eq.s32.totalorder %s29, 1
      %p157 = por %p155, %p156
      %p158 = scmp.ne.s32.totalorder %s149, %s150
      %p159 = scmp.eq.s32.totalorder %s29, 0
      %p160 = por %p158, %p159
      %p161 = scmp.ne.s32.totalorder %s149, %s150
      %p162 = scmp.eq.s32.totalorder %s30, 1
      %p163 = por %p161, %p162
      %p165 = scmp.ne.s32.totalorder %s150, %s164
      %p166 = scmp.eq.s32.totalorder %s30, 0
      %p167 = por %p165, %p166
      %s169 = sadd.s32 %s168, 1
      %p172 = scmp.eq.s32.totalorder %s24, 1
      %p173 = scmp.ne.s32.totalorder %s168, %s170
      %p174 = scmp.eq.s32.totalorder %s24, 0
      %p175 = por %p173, %p174
      %p176 = scmp.ne.s32.totalorder %s168, %s170
      %p177 = scmp.eq.s32.totalorder %s29, 1
      %p178 = por %p176, %p177
      %p179 = scmp.ne.s32.totalorder %s170, %s171
      %p180 = scmp.eq.s32.totalorder %s29, 0
      %p181 = por %p179, %p180
      %p182 = scmp.ne.s32.totalorder %s170, %s171
      %p183 = scmp.eq.s32.totalorder %s30, 1
      %p184 = por %p182, %p183
      %p186 = scmp.ne.s32.totalorder %s171, %s185
      %p187 = scmp.eq.s32.totalorder %s30, 0
      %p188 = por %p186, %p187
      %s189 = ssub.s32 %s24, %s31
      %p190 = scmp.eq.s32.totalorder %s189, 0
      %s192 = sadd.s32 %s191, 1
      %s193 = scalar_select %p190, %s191, %s192
      %p196 = pneg %p190
      %p197 = scmp.eq.s32.totalorder %s24, 1
      %p198 = por %p196, %p197
      %p199 = scmp.ne.s32.totalorder %s191, %s194
      %p200 = scmp.eq.s32.totalorder %s24, 0
      %p201 = por %p199, %p200
      %p202 = scmp.ne.s32.totalorder %s191, %s194
      %p203 = scmp.eq.s32.totalorder %s29, 1
      %p204 = por %p202, %p203
      %p205 = scmp.ne.s32.totalorder %s194, %s195
      %p206 = scmp.eq.s32.totalorder %s29, 0
      %p207 = por %p205, %p206
      %p208 = scmp.ne.s32.totalorder %s194, %s195
      %p209 = scmp.eq.s32.totalorder %s30, 1
      %p210 = por %p208, %p209
      %p212 = scmp.ne.s32.totalorder %s195, %s211
      %p213 = scmp.eq.s32.totalorder %s30, 0
      %p214 = por %p212, %p213
      %p215 = scmp.le.s32.totalorder 1, %s24
      %p216 = scmp.lt.s32.totalorder %s24, 3
      %p217 = pnand %p215, %p216
      %p218 = pneg %p217
      // Predicated region
      $region9: #{tpu_custom_call.1} parent=5 // pred_check
        _
      $region10: #{tpu_custom_call.1} parent=5 // pred_check_branch
        %220 = sbr.rel (%p217) target = $region12
      $region11: #{tpu_custom_call.1} parent=5 // pred_region
        %s221 = ssub.s32 %s24, 1
        // Predicated region
        $region13: #{tpu_custom_call.1} parent=11 // pred_check
          %p222 = pneg %p97
        $region14: #{tpu_custom_call.1} parent=11 // pred_check_branch
          %224 = sbr.rel (%p222) target = $region16
        $region15: #{tpu_custom_call.1} parent=11 // pred_region
          %226 = vsyncadd [#allocation6], 0
          %s227 = sshll.u32 %s2, 4
          %s228 = int_to_ptr.hbm [resolvable:$true] %s227
          %s229 = sshll.u32 [#allocation7], 4
          %s230 = int_to_ptr.vmem [resolvable:$true] %s229
          %235 = dma.hbm_to_vmem [thread:$0]  %s228, 8192, %s230, [#allocation6], 256, 256, 16
        $region16: #{tpu_custom_call.1} parent=11 // pred_fallthru
          _
        // Predicated region
        $region17: #{tpu_custom_call.1} parent=11 // pred_check
          %p236 = pneg %p118
        $region18: #{tpu_custom_call.1} parent=11 // pred_check_branch
          %238 = sbr.rel (%p236) target = $region20
        $region19: #{tpu_custom_call.1} parent=11 // pred_region
          %240 = vsyncadd [#allocation9], 0
          %s242 = sshll.u32 %s3, 4
          %s243 = int_to_ptr.hbm [resolvable:$true] %s242
          %s244 = sshll.u32 [#allocation8], 4
          %s245 = int_to_ptr.vmem [resolvable:$true] %s244
          %247 = dma.hbm_to_vmem [thread:$0]  %s243, 64, %s245, [#allocation9]
        $region20: #{tpu_custom_call.1} parent=11 // pred_fallthru
          _
        // Predicated region
        $region21: #{tpu_custom_call.1} parent=11 // pred_check
          %p248 = pneg %p139
        $region22: #{tpu_custom_call.1} parent=11 // pred_check_branch
          %250 = sbr.rel (%p248) target = $region24
        $region23: #{tpu_custom_call.1} parent=11 // pred_region
          %252 = vsyncadd [#allocation9], 0
          %s253 = sshll.u32 %s4, 4
          %s254 = int_to_ptr.hbm [resolvable:$true] %s253
          %s255 = sshll.u32 [#allocation10], 4
          %s256 = int_to_ptr.vmem [resolvable:$true] %s255
          %261 = dma.hbm_to_vmem [thread:$0]  %s254, 16384, %s256, [#allocation9], 128, 128, 8
        $region24: #{tpu_custom_call.1} parent=11 // pred_fallthru
          _
        // Predicated region
        $region25: #{tpu_custom_call.1} parent=11 // pred_check
          %p262 = pneg %p160
        $region26: #{tpu_custom_call.1} parent=11 // pred_check_branch
          %264 = sbr.rel (%p262) target = $region28
        $region27: #{tpu_custom_call.1} parent=11 // pred_region
          %266 = vsyncadd [#allocation12], 0
          %s268 = sshll.u32 %s5, 4
          %s269 = int_to_ptr.hbm [resolvable:$true] %s268
          %s270 = sshll.u32 [#allocation11], 4
          %s271 = int_to_ptr.vmem [resolvable:$true] %s270
          %273 = dma.hbm_to_vmem [thread:$0]  %s269, 128, %s271, [#allocation12]
        $region28: #{tpu_custom_call.1} parent=11 // pred_fallthru
          _
        // Predicated region
        $region29: #{tpu_custom_call.1} parent=11 // pred_check
          %p274 = pneg %p181
        $region30: #{tpu_custom_call.1} parent=11 // pred_check_branch
          %276 = sbr.rel (%p274) target = $region32
        $region31: #{tpu_custom_call.1} parent=11 // pred_region
          %278 = vsyncadd [#allocation12], 0
          %s280 = sshll.u32 %s6, 4
          %s281 = int_to_ptr.hbm [resolvable:$true] %s280
          %s282 = sshll.u32 [#allocation13], 4
          %s283 = int_to_ptr.vmem [resolvable:$true] %s282
          %285 = dma.hbm_to_vmem [thread:$0]  %s281, 128, %s283, [#allocation12]
        $region32: #{tpu_custom_call.1} parent=11 // pred_fallthru
          _
      $region12: #{tpu_custom_call.1} parent=5 // pred_fallthru
        _
      %p286 = scmp.lt.s32.totalorder %s24, 2
      // Predicated region
      $region33: #{tpu_custom_call.1} parent=5 // pred_check
        %p287 = pneg %p286
      $region34: #{tpu_custom_call.1} parent=5 // pred_check_branch
        %289 = sbr.rel (%p287) target = $region36
      $region35: #{tpu_custom_call.1} parent=5 // pred_region
        // Predicated region
        $region37: #{tpu_custom_call.1} parent=35 // pred_check
          %p290 = pneg %p44
        $region38: #{tpu_custom_call.1} parent=35 // pred_check_branch
          %292 = sbr.rel (%p290) target = $region40
        $region39: #{tpu_custom_call.1} parent=35 // pred_region
          %s293 = sand.u32 %s34, 1
          %s294 = scalar_lea.sflag [#allocation3], %s293
          %s295 = sand.u32 %s34, 1
          %s296 = smul.addr %s295, 32
          %s297 = scalar_lea.vmem [#allocation2], %s296
          %299 = vsyncadd %s294, 0
          %s300 = smul.addr %s24, 4
          %s301 = smul.addr %s300, 8
          %s302 = scalar_lea.hbm %s0, %s301
          %s303 = sshll.u32 %s302, 4
          %s304 = int_to_ptr.hbm [resolvable:$true] %s303
          %s305 = sshll.u32 %s297, 4
          %s306 = int_to_ptr.vmem [resolvable:$true] %s305
          %311 = dma.hbm_to_vmem [thread:$0]  %s304, 512, %s306, %s294, 256, 256, 16
        $region40: #{tpu_custom_call.1} parent=35 // pred_fallthru
          _
        // Predicated region
        $region41: #{tpu_custom_call.1} parent=35 // pred_check
          %p312 = pneg %p70
        $region42: #{tpu_custom_call.1} parent=35 // pred_check_branch
          %314 = sbr.rel (%p312) target = $region44
        $region43: #{tpu_custom_call.1} parent=35 // pred_region
          %s315 = sand.u32 %s24, 1
          %s316 = scalar_lea.sflag [#allocation6], %s315
          %s317 = sand.u32 %s60, 1
          %s318 = smul.addr %s317, 32
          %s319 = scalar_lea.vmem [#allocation5], %s318
          %321 = vsyncadd %s316, 0
          %s322 = smul.addr %s24, 4
          %s323 = smul.addr %s322, 8
          %s324 = scalar_lea.hbm %s1, %s323
          %s325 = sshll.u32 %s324, 4
          %s326 = int_to_ptr.hbm [resolvable:$true] %s325
          %s327 = sshll.u32 %s319, 4
          %s328 = int_to_ptr.vmem [resolvable:$true] %s327
          %333 = dma.hbm_to_vmem [thread:$0]  %s326, 512, %s328, %s316, 256, 256, 16
        $region44: #{tpu_custom_call.1} parent=35 // pred_fallthru
          _
      $region36: #{tpu_custom_call.1} parent=5 // pred_fallthru
        _
      %p334 = scmp.le.s32.totalorder 1, %s24
      %p335 = scmp.lt.s32.totalorder %s24, 3
      %p336 = pnand %p334, %p335
      %p337 = pneg %p336
      // Predicated region
      $region45: #{tpu_custom_call.1} parent=5 // pred_check
        _
      $region46: #{tpu_custom_call.1} parent=5 // pred_check_branch
        %339 = sbr.rel (%p336) target = $region48
      $region47: #{tpu_custom_call.1} parent=5 // pred_region
        %s340 = ssub.s32 %s24, 1
        %s341 = sand.u32 %s37, 1
        %s342 = scalar_lea.sflag [#allocation3], %s341
        %s343 = sand.u32 %s37, 1
        %s344 = smul.addr %s343, 32
        %s345 = scalar_lea.vmem [#allocation2], %s344
        // Predicated region
        $region49: #{tpu_custom_call.1} parent=47 // pred_check
          %p346 = pneg %p50
        $region50: #{tpu_custom_call.1} parent=47 // pred_check_branch
          %348 = sbr.rel (%p346) target = $region52
        $region51: #{tpu_custom_call.1} parent=47 // pred_region
          %350 = dma.done %s342, 512
        $region52: #{tpu_custom_call.1} parent=47 // pred_fallthru
          _
        %s351 = sand.u32 %s29, 1
        %s352 = scalar_lea.sflag [#allocation6], %s351
        %s353 = sand.u32 %s63, 1
        %s354 = smul.addr %s353, 32
        %s355 = scalar_lea.vmem [#allocation5], %s354
        // Predicated region
        $region53: #{tpu_custom_call.1} parent=47 // pred_check
          %p356 = pneg %p76
        $region54: #{tpu_custom_call.1} parent=47 // pred_check_branch
          %358 = sbr.rel (%p356) target = $region56
        $region55: #{tpu_custom_call.1} parent=47 // pred_region
          %360 = dma.done %s352, 512
        $region56: #{tpu_custom_call.1} parent=47 // pred_fallthru
          _
        // Predicated region
        $region57: #{tpu_custom_call.1} parent=47 // pred_check
          %p361 = pneg %p97
        $region58: #{tpu_custom_call.1} parent=47 // pred_check_branch
          %363 = sbr.rel (%p361) target = $region60
        $region59: #{tpu_custom_call.1} parent=47 // pred_region
          %365 = dma.done [#allocation6], 8192
        $region60: #{tpu_custom_call.1} parent=47 // pred_fallthru
          _
        // Predicated region
        $region61: #{tpu_custom_call.1} parent=47 // pred_check
          %p366 = pneg %p118
        $region62: #{tpu_custom_call.1} parent=47 // pred_check_branch
          %368 = sbr.rel (%p366) target = $region64
        $region63: #{tpu_custom_call.1} parent=47 // pred_region
          %370 = dma.done [#allocation9], 64
        $region64: #{tpu_custom_call.1} parent=47 // pred_fallthru
          _
        // Predicated region
        $region65: #{tpu_custom_call.1} parent=47 // pred_check
          %p371 = pneg %p139
        $region66: #{tpu_custom_call.1} parent=47 // pred_check_branch
          %373 = sbr.rel (%p371) target = $region68
        $region67: #{tpu_custom_call.1} parent=47 // pred_region
          %375 = dma.done [#allocation9], 16384
        $region68: #{tpu_custom_call.1} parent=47 // pred_fallthru
          _
        // Predicated region
        $region69: #{tpu_custom_call.1} parent=47 // pred_check
          %p376 = pneg %p160
        $region70: #{tpu_custom_call.1} parent=47 // pred_check_branch
          %378 = sbr.rel (%p376) target = $region72
        $region71: #{tpu_custom_call.1} parent=47 // pred_region
          %380 = dma.done [#allocation12], 128
        $region72: #{tpu_custom_call.1} parent=47 // pred_fallthru
          _
        // Predicated region
        $region73: #{tpu_custom_call.1} parent=47 // pred_check
          %p381 = pneg %p181
        $region74: #{tpu_custom_call.1} parent=47 // pred_check_branch
          %383 = sbr.rel (%p381) target = $region76
        $region75: #{tpu_custom_call.1} parent=47 // pred_region
          %385 = dma.done [#allocation12], 128
        $region76: #{tpu_custom_call.1} parent=47 // pred_fallthru
          _
        %s386 = sand.u32 %s37, 1
        %s387 = scalar_lea.sflag [#allocation3], %s386
        %s388 = sand.u32 %s37, 1
        %s389 = smul.addr %s388, 32
        %s390 = scalar_lea.vmem [#allocation2], %s389
        %p391 = pneg %p50
        %p392 = pneg %p47
        %s393 = sand.u32 %s29, 1
        %s394 = scalar_lea.sflag [#allocation6], %s393
        %s395 = sand.u32 %s63, 1
        %s396 = smul.addr %s395, 32
        %s397 = scalar_lea.vmem [#allocation5], %s396
        %p398 = pneg %p76
        %p399 = pneg %p73
        %p400 = pneg %p97
        %p401 = pneg %p94
        %p402 = pneg %p118
        %p403 = pneg %p115
        %p404 = pneg %p139
        %p405 = pneg %p136
        %p406 = pneg %p160
        %p407 = pneg %p157
        %p408 = pneg %p181
        %p409 = pneg %p178
        %p410 = pneg %p207
        %p411 = pneg %p204
        %s412 = sand.u32 %s194, 1
        %s413 = scalar_lea.sflag [#allocation4], %s412
        %s414 = sand.u32 %s194, 1
        %s415 = smul.addr %s414, 32
        %s416 = scalar_lea.vmem [#allocation14], %s415
        %v418 = vld [vmem:[%s345] sm:$0xff]
        %v419 = vld [vmem:[%s345 + $0x8] sm:$0xff]
        %v420 = vld [vmem:[%s345 + $0x10] sm:$0xff]
        %v421 = vld [vmem:[%s345 + $0x18] sm:$0xff]
        %v422 = vld [vmem:[%s355] sm:$0xff]
        %v423 = vld [vmem:[%s355 + $0x8] sm:$0xff]
        %v424 = vld [vmem:[%s355 + $0x10] sm:$0xff]
        %v425 = vld [vmem:[%s355 + $0x18] sm:$0xff]
        %v426 = vadd.f32 %v418, %v422
        %v427 = vadd.f32 %v419, %v423
        %v428 = vadd.f32 %v420, %v424
        %v429 = vadd.f32 %v421, %v425
        %v430 = vld [vmem:[#allocation11] sm:$0xff]
        %v431 = vld [vmem:[#allocation13] sm:$0xff]
        %v432 = vpack.c.bf16 %v428, %v426
        %v433 = vpack.c.bf16 %v429, %v427
        %v434 = vld [vmem:[#allocation7] sm:$0xff]
        %v435 = vld [vmem:[#allocation7 + $0x8] sm:$0xff]
        %v436 = vld [vmem:[#allocation7 + $0x10] sm:$0xff]
        %v437 = vld [vmem:[#allocation7 + $0x18] sm:$0xff]
        %v438 = vld [vmem:[#allocation7 + $0x20] sm:$0xff]
        %v439 = vld [vmem:[#allocation7 + $0x28] sm:$0xff]
        %v440 = vld [vmem:[#allocation7 + $0x30] sm:$0xff]
        %v441 = vld [vmem:[#allocation7 + $0x38] sm:$0xff]
        %v442 = vld [vmem:[#allocation7 + $0x40] sm:$0xff]
        %v443 = vld [vmem:[#allocation7 + $0x48] sm:$0xff]
        %v444 = vld [vmem:[#allocation7 + $0x50] sm:$0xff]
        %v445 = vld [vmem:[#allocation7 + $0x58] sm:$0xff]
        %v446 = vld [vmem:[#allocation7 + $0x60] sm:$0xff]
        %v447 = vld [vmem:[#allocation7 + $0x68] sm:$0xff]
        %v448 = vld [vmem:[#allocation7 + $0x70] sm:$0xff]
        %v449 = vld [vmem:[#allocation7 + $0x78] sm:$0xff]
        %v450 = vld [vmem:[#allocation7 + $0x80] sm:$0xff]
        %v451 = vld [vmem:[#allocation7 + $0x88] sm:$0xff]
        %v452 = vld [vmem:[#allocation7 + $0x90] sm:$0xff]
        %v453 = vld [vmem:[#allocation7 + $0x98] sm:$0xff]
        %v454 = vld [vmem:[#allocation7 + $0xa0] sm:$0xff]
        %v455 = vld [vmem:[#allocation7 + $0xa8] sm:$0xff]
        %v456 = vld [vmem:[#allocation7 + $0xb0] sm:$0xff]
        %v457 = vld [vmem:[#allocation7 + $0xb8] sm:$0xff]
        %v458 = vld [vmem:[#allocation7 + $0xc0] sm:$0xff]
        %v459 = vld [vmem:[#allocation7 + $0xc8] sm:$0xff]
        %v460 = vld [vmem:[#allocation7 + $0xd0] sm:$0xff]
        %v461 = vld [vmem:[#allocation7 + $0xd8] sm:$0xff]
        %v462 = vld [vmem:[#allocation7 + $0xe0] sm:$0xff]
        %v463 = vld [vmem:[#allocation7 + $0xe8] sm:$0xff]
        %v464 = vld [vmem:[#allocation7 + $0xf0] sm:$0xff]
        %v465 = vld [vmem:[#allocation7 + $0xf8] sm:$0xff]
        %v466 = vld [vmem:[#allocation7 + $0x100] sm:$0xff]
        %v467 = vld [vmem:[#allocation7 + $0x108] sm:$0xff]
        %v468 = vld [vmem:[#allocation7 + $0x110] sm:$0xff]
        %v469 = vld [vmem:[#allocation7 + $0x118] sm:$0xff]
        %v470 = vld [vmem:[#allocation7 + $0x120] sm:$0xff]
        %v471 = vld [vmem:[#allocation7 + $0x128] sm:$0xff]
        %v472 = vld [vmem:[#allocation7 + $0x130] sm:$0xff]
        %v473 = vld [vmem:[#allocation7 + $0x138] sm:$0xff]
        %v474 = vld [vmem:[#allocation7 + $0x140] sm:$0xff]
        %v475 = vld [vmem:[#allocation7 + $0x148] sm:$0xff]
        %v476 = vld [vmem:[#allocation7 + $0x150] sm:$0xff]
        %v477 = vld [vmem:[#allocation7 + $0x158] sm:$0xff]
        %v478 = vld [vmem:[#allocation7 + $0x160] sm:$0xff]
        %v479 = vld [vmem:[#allocation7 + $0x168] sm:$0xff]
        %v480 = vld [vmem:[#allocation7 + $0x170] sm:$0xff]
        %v481 = vld [vmem:[#allocation7 + $0x178] sm:$0xff]
        %v482 = vld [vmem:[#allocation7 + $0x180] sm:$0xff]
        %v483 = vld [vmem:[#allocation7 + $0x188] sm:$0xff]
        %v484 = vld [vmem:[#allocation7 + $0x190] sm:$0xff]
        %v485 = vld [vmem:[#allocation7 + $0x198] sm:$0xff]
        %v486 = vld [vmem:[#allocation7 + $0x1a0] sm:$0xff]
        %v487 = vld [vmem:[#allocation7 + $0x1a8] sm:$0xff]
        %v488 = vld [vmem:[#allocation7 + $0x1b0] sm:$0xff]
        %v489 = vld [vmem:[#allocation7 + $0x1b8] sm:$0xff]
        %v490 = vld [vmem:[#allocation7 + $0x1c0] sm:$0xff]
        %v491 = vld [vmem:[#allocation7 + $0x1c8] sm:$0xff]
        %v492 = vld [vmem:[#allocation7 + $0x1d0] sm:$0xff]
        %v493 = vld [vmem:[#allocation7 + $0x1d8] sm:$0xff]
        %v494 = vld [vmem:[#allocation7 + $0x1e0] sm:$0xff]
        %v495 = vld [vmem:[#allocation7 + $0x1e8] sm:$0xff]
        %v496 = vld [vmem:[#allocation7 + $0x1f0] sm:$0xff]
        %v497 = vld [vmem:[#allocation7 + $0x1f8] sm:$0xff]
        %v498 = vld [vmem:[#allocation8] sm:$0xf]
        %v500 = vperm.slane %v498, 0
        %v501 = vperm.slane %v498, 1
        %v502 = vperm.slane %v498, 2
        %v503 = vperm.slane %v498, 3
        %v572 = vunpack.c.l.b16 %v434
        %v573 = vunpack.c.h.b16 %v434
        %v574 = vunpack.c.l.b16 %v435
        %v575 = vunpack.c.h.b16 %v435
        %v576 = vunpack.c.l.b16 %v436
        %v577 = vunpack.c.h.b16 %v436
        %v578 = vunpack.c.l.b16 %v437
        %v579 = vunpack.c.h.b16 %v437
        %v580 = vunpack.c.l.b16 %v438
        %v581 = vunpack.c.h.b16 %v438
        %v582 = vunpack.c.l.b16 %v439
        %v583 = vunpack.c.h.b16 %v439
        %v584 = vunpack.c.l.b16 %v440
        %v585 = vunpack.c.h.b16 %v440
        %v586 = vunpack.c.l.b16 %v441
        %v587 = vunpack.c.h.b16 %v441
        %v588 = vunpack.c.l.b16 %v442
        %v589 = vunpack.c.h.b16 %v442
        %v590 = vunpack.c.l.b16 %v443
        %v591 = vunpack.c.h.b16 %v443
        %v592 = vunpack.c.l.b16 %v444
        %v593 = vunpack.c.h.b16 %v444
        %v594 = vunpack.c.l.b16 %v445
        %v595 = vunpack.c.h.b16 %v445
        %v596 = vunpack.c.l.b16 %v446
        %v597 = vunpack.c.h.b16 %v446
        %v598 = vunpack.c.l.b16 %v447
        %v599 = vunpack.c.h.b16 %v447
        %v600 = vunpack.c.l.b16 %v448
        %v601 = vunpack.c.h.b16 %v448
        %v602 = vunpack.c.l.b16 %v449
        %v603 = vunpack.c.h.b16 %v449
        %v604 = vunpack.c.l.b16 %v450
        %v605 = vunpack.c.h.b16 %v450
        %v606 = vunpack.c.l.b16 %v451
        %v607 = vunpack.c.h.b16 %v451
        %v608 = vunpack.c.l.b16 %v452
        %v609 = vunpack.c.h.b16 %v452
        %v610 = vunpack.c.l.b16 %v453
        %v611 = vunpack.c.h.b16 %v453
        %v612 = vunpack.c.l.b16 %v454
        %v613 = vunpack.c.h.b16 %v454
        %v614 = vunpack.c.l.b16 %v455
        %v615 = vunpack.c.h.b16 %v455
        %v616 = vunpack.c.l.b16 %v456
        %v617 = vunpack.c.h.b16 %v456
        %v618 = vunpack.c.l.b16 %v457
        %v619 = vunpack.c.h.b16 %v457
        %v620 = vunpack.c.l.b16 %v458
        %v621 = vunpack.c.h.b16 %v458
        %v622 = vunpack.c.l.b16 %v459
        %v623 = vunpack.c.h.b16 %v459
        %v624 = vunpack.c.l.b16 %v460
        %v625 = vunpack.c.h.b16 %v460
        %v626 = vunpack.c.l.b16 %v461
        %v627 = vunpack.c.h.b16 %v461
        %v628 = vunpack.c.l.b16 %v462
        %v629 = vunpack.c.h.b16 %v462
        %v630 = vunpack.c.l.b16 %v463
        %v631 = vunpack.c.h.b16 %v463
        %v632 = vunpack.c.l.b16 %v464
        %v633 = vunpack.c.h.b16 %v464
        %v634 = vunpack.c.l.b16 %v465
        %v635 = vunpack.c.h.b16 %v465
        %v636 = vunpack.c.l.b16 %v466
        %v637 = vunpack.c.h.b16 %v466
        %v638 = vunpack.c.l.b16 %v467
        %v639 = vunpack.c.h.b16 %v467
        %v640 = vunpack.c.l.b16 %v468
        %v641 = vunpack.c.h.b16 %v468
        %v642 = vunpack.c.l.b16 %v469
        %v643 = vunpack.c.h.b16 %v469
        %v644 = vunpack.c.l.b16 %v470
        %v645 = vunpack.c.h.b16 %v470
        %v646 = vunpack.c.l.b16 %v471
        %v647 = vunpack.c.h.b16 %v471
        %v648 = vunpack.c.l.b16 %v472
        %v649 = vunpack.c.h.b16 %v472
        %v650 = vunpack.c.l.b16 %v473
        %v651 = vunpack.c.h.b16 %v473
        %v652 = vunpack.c.l.b16 %v474
        %v653 = vunpack.c.h.b16 %v474
        %v654 = vunpack.c.l.b16 %v475
        %v655 = vunpack.c.h.b16 %v475
        %v656 = vunpack.c.l.b16 %v476
        %v657 = vunpack.c.h.b16 %v476
        %v658 = vunpack.c.l.b16 %v477
        %v659 = vunpack.c.h.b16 %v477
        %v660 = vunpack.c.l.b16 %v478
        %v661 = vunpack.c.h.b16 %v478
        %v662 = vunpack.c.l.b16 %v479
        %v663 = vunpack.c.h.b16 %v479
        %v664 = vunpack.c.l.b16 %v480
        %v665 = vunpack.c.h.b16 %v480
        %v666 = vunpack.c.l.b16 %v481
        %v667 = vunpack.c.h.b16 %v481
        %v668 = vunpack.c.l.b16 %v482
        %v669 = vunpack.c.h.b16 %v482
        %v670 = vunpack.c.l.b16 %v483
        %v671 = vunpack.c.h.b16 %v483
        %v672 = vunpack.c.l.b16 %v484
        %v673 = vunpack.c.h.b16 %v484
        %v674 = vunpack.c.l.b16 %v485
        %v675 = vunpack.c.h.b16 %v485
        %v676 = vunpack.c.l.b16 %v486
        %v677 = vunpack.c.h.b16 %v486
        %v678 = vunpack.c.l.b16 %v487
        %v679 = vunpack.c.h.b16 %v487
        %v680 = vunpack.c.l.b16 %v488
        %v681 = vunpack.c.h.b16 %v488
        %v682 = vunpack.c.l.b16 %v489
        %v683 = vunpack.c.h.b16 %v489
        %v684 = vunpack.c.l.b16 %v490
        %v685 = vunpack.c.h.b16 %v490
        %v686 = vunpack.c.l.b16 %v491
        %v687 = vunpack.c.h.b16 %v491
        %v688 = vunpack.c.l.b16 %v492
        %v689 = vunpack.c.h.b16 %v492
        %v690 = vunpack.c.l.b16 %v493
        %v691 = vunpack.c.h.b16 %v493
        %v692 = vunpack.c.l.b16 %v494
        %v693 = vunpack.c.h.b16 %v494
        %v694 = vunpack.c.l.b16 %v495
        %v695 = vunpack.c.h.b16 %v495
        %v696 = vunpack.c.l.b16 %v496
        %v697 = vunpack.c.h.b16 %v496
        %v698 = vunpack.c.l.b16 %v497
        %v699 = vunpack.c.h.b16 %v497
        %v700 = vpack.c.b16 %v576, %v572
        %v701 = vpack.c.b16 %v577, %v573
        %v702 = vpack.c.b16 %v578, %v574
        %v703 = vpack.c.b16 %v579, %v575
        %v704 = vpack.c.b16 %v584, %v580
        %v705 = vpack.c.b16 %v585, %v581
        %v706 = vpack.c.b16 %v586, %v582
        %v707 = vpack.c.b16 %v587, %v583
        %v708 = vpack.c.b16 %v592, %v588
        %v709 = vpack.c.b16 %v593, %v589
        %v710 = vpack.c.b16 %v594, %v590
        %v711 = vpack.c.b16 %v595, %v591
        %v712 = vpack.c.b16 %v600, %v596
        %v713 = vpack.c.b16 %v601, %v597
        %v714 = vpack.c.b16 %v602, %v598
        %v715 = vpack.c.b16 %v603, %v599
        %v716 = vpack.c.b16 %v608, %v604
        %v717 = vpack.c.b16 %v609, %v605
        %v718 = vpack.c.b16 %v610, %v606
        %v719 = vpack.c.b16 %v611, %v607
        %v720 = vpack.c.b16 %v616, %v612
        %v721 = vpack.c.b16 %v617, %v613
        %v722 = vpack.c.b16 %v618, %v614
        %v723 = vpack.c.b16 %v619, %v615
        %v724 = vpack.c.b16 %v624, %v620
        %v725 = vpack.c.b16 %v625, %v621
        %v726 = vpack.c.b16 %v626, %v622
        %v727 = vpack.c.b16 %v627, %v623
        %v728 = vpack.c.b16 %v632, %v628
        %v729 = vpack.c.b16 %v633, %v629
        %v730 = vpack.c.b16 %v634, %v630
        %v731 = vpack.c.b16 %v635, %v631
        %v732 = vpack.c.b16 %v640, %v636
        %v733 = vpack.c.b16 %v641, %v637
        %v734 = vpack.c.b16 %v642, %v638
        %v735 = vpack.c.b16 %v643, %v639
        %v736 = vpack.c.b16 %v648, %v644
        %v737 = vpack.c.b16 %v649, %v645
        %v738 = vpack.c.b16 %v650, %v646
        %v739 = vpack.c.b16 %v651, %v647
        %v740 = vpack.c.b16 %v656, %v652
        %v741 = vpack.c.b16 %v657, %v653
        %v742 = vpack.c.b16 %v658, %v654
        %v743 = vpack.c.b16 %v659, %v655
        %v744 = vpack.c.b16 %v664, %v660
        %v745 = vpack.c.b16 %v665, %v661
        %v746 = vpack.c.b16 %v666, %v662
        %v747 = vpack.c.b16 %v667, %v663
        %v748 = vpack.c.b16 %v672, %v668
        %v749 = vpack.c.b16 %v673, %v669
        %v750 = vpack.c.b16 %v674, %v670
        %v751 = vpack.c.b16 %v675, %v671
        %v752 = vpack.c.b16 %v680, %v676
        %v753 = vpack.c.b16 %v681, %v677
        %v754 = vpack.c.b16 %v682, %v678
        %v755 = vpack.c.b16 %v683, %v679
        %v756 = vpack.c.b16 %v688, %v684
        %v757 = vpack.c.b16 %v689, %v685
        %v758 = vpack.c.b16 %v690, %v686
        %v759 = vpack.c.b16 %v691, %v687
        %v760 = vpack.c.b16 %v696, %v692
        %v761 = vpack.c.b16 %v697, %v693
        %v762 = vpack.c.b16 %v698, %v694
        %v763 = vpack.c.b16 %v699, %v695
        %828 = vmatpush.bf16.msra.mxu0 %v728
        %829 = vmatpush.bf16.msra.mxu0 %v724
        %830 = vmatpush.bf16.msra.mxu0 %v720
        %831 = vmatpush.bf16.msra.mxu0 %v716
        %832 = vmatpush.bf16.msra.mxu0 %v712
        %833 = vmatpush.bf16.msra.mxu0 %v708
        %834 = vmatpush.bf16.msra.mxu0 %v704
        %835 = vmatpush.bf16.msra.mxu0 %v700
        %836 = vmatmul.bf16.gmra.mxu0 %v432
        %v837 = vpop.f32.mrf.mxu0
        %v838 = vadd.f32 %v500, %v837
        %v839 = vpop.f32.mrf.mxu0
        %v840 = vadd.f32 %v500, %v839
        %841 = vdwg.mxu0
        %842 = vmatpush.bf16.msra.mxu0 %v760
        %843 = vmatpush.bf16.msra.mxu0 %v756
        %844 = vmatpush.bf16.msra.mxu0 %v752
        %845 = vmatpush.bf16.msra.mxu0 %v748
        %846 = vmatpush.bf16.msra.mxu0 %v744
        %847 = vmatpush.bf16.msra.mxu0 %v740
        %848 = vmatpush.bf16.msra.mxu0 %v736
        %849 = vmatpush.bf16.msra.mxu0 %v732
        %850 = vmatmul.bf16.gmra.mxu0 %v433
        %v851 = vpop.f32.mrf.mxu0
        %v852 = vadd.f32 %v838, %v851
        %v853 = vpop.f32.mrf.mxu0
        %v854 = vadd.f32 %v840, %v853
        %855 = vdwg.mxu0
        %856 = vmatpush.bf16.msra.mxu0 %v729
        %857 = vmatpush.bf16.msra.mxu0 %v725
        %858 = vmatpush.bf16.msra.mxu0 %v721
        %859 = vmatpush.bf16.msra.mxu0 %v717
        %860 = vmatpush.bf16.msra.mxu0 %v713
        %861 = vmatpush.bf16.msra.mxu0 %v709
        %862 = vmatpush.bf16.msra.mxu0 %v705
        %863 = vmatpush.bf16.msra.mxu0 %v701
        %864 = vmatmul.bf16.gmra.mxu0 %v432
        %v865 = vpop.f32.mrf.mxu0
        %v866 = vadd.f32 %v501, %v865
        %v867 = vpop.f32.mrf.mxu0
        %v868 = vadd.f32 %v501, %v867
        %869 = vdwg.mxu0
        %870 = vmatpush.bf16.msra.mxu0 %v761
        %871 = vmatpush.bf16.msra.mxu0 %v757
        %872 = vmatpush.bf16.msra.mxu0 %v753
        %873 = vmatpush.bf16.msra.mxu0 %v749
        %874 = vmatpush.bf16.msra.mxu0 %v745
        %875 = vmatpush.bf16.msra.mxu0 %v741
        %876 = vmatpush.bf16.msra.mxu0 %v737
        %877 = vmatpush.bf16.msra.mxu0 %v733
        %878 = vmatmul.bf16.gmra.mxu0 %v433
        %v879 = vpop.f32.mrf.mxu0
        %v880 = vadd.f32 %v866, %v879
        %v881 = vpop.f32.mrf.mxu0
        %v882 = vadd.f32 %v868, %v881
        %883 = vdwg.mxu0
        %884 = vmatpush.bf16.msra.mxu0 %v730
        %885 = vmatpush.bf16.msra.mxu0 %v726
        %886 = vmatpush.bf16.msra.mxu0 %v722
        %887 = vmatpush.bf16.msra.mxu0 %v718
        %888 = vmatpush.bf16.msra.mxu0 %v714
        %889 = vmatpush.bf16.msra.mxu0 %v710
        %890 = vmatpush.bf16.msra.mxu0 %v706
        %891 = vmatpush.bf16.msra.mxu0 %v702
        %892 = vmatmul.bf16.gmra.mxu0 %v432
        %v893 = vpop.f32.mrf.mxu0
        %v894 = vadd.f32 %v502, %v893
        %v895 = vpop.f32.mrf.mxu0
        %v896 = vadd.f32 %v502, %v895
        %897 = vdwg.mxu0
        %898 = vmatpush.bf16.msra.mxu0 %v762
        %899 = vmatpush.bf16.msra.mxu0 %v758
        %900 = vmatpush.bf16.msra.mxu0 %v754
        %901 = vmatpush.bf16.msra.mxu0 %v750
        %902 = vmatpush.bf16.msra.mxu0 %v746
        %903 = vmatpush.bf16.msra.mxu0 %v742
        %904 = vmatpush.bf16.msra.mxu0 %v738
        %905 = vmatpush.bf16.msra.mxu0 %v734
        %906 = vmatmul.bf16.gmra.mxu0 %v433
        %v907 = vpop.f32.mrf.mxu0
        %v908 = vadd.f32 %v894, %v907
        %v909 = vpop.f32.mrf.mxu0
        %v910 = vadd.f32 %v896, %v909
        %911 = vdwg.mxu0
        %912 = vmatpush.bf16.msra.mxu0 %v731
        %913 = vmatpush.bf16.msra.mxu0 %v727
        %914 = vmatpush.bf16.msra.mxu0 %v723
        %915 = vmatpush.bf16.msra.mxu0 %v719
        %916 = vmatpush.bf16.msra.mxu0 %v715
        %917 = vmatpush.bf16.msra.mxu0 %v711
        %918 = vmatpush.bf16.msra.mxu0 %v707
        %919 = vmatpush.bf16.msra.mxu0 %v703
        %920 = vmatmul.bf16.gmra.mxu0 %v432
        %v921 = vpop.f32.mrf.mxu0
        %v922 = vadd.f32 %v503, %v921
        %v923 = vpop.f32.mrf.mxu0
        %v924 = vadd.f32 %v503, %v923
        %925 = vdwg.mxu0
        %926 = vmatpush.bf16.msra.mxu0 %v763
        %927 = vmatpush.bf16.msra.mxu0 %v759
        %928 = vmatpush.bf16.msra.mxu0 %v755
        %929 = vmatpush.bf16.msra.mxu0 %v751
        %930 = vmatpush.bf16.msra.mxu0 %v747
        %931 = vmatpush.bf16.msra.mxu0 %v743
        %932 = vmatpush.bf16.msra.mxu0 %v739
        %933 = vmatpush.bf16.msra.mxu0 %v735
        %934 = vmatmul.bf16.gmra.mxu0 %v433
        %v935 = vpop.f32.mrf.mxu0
        %v936 = vadd.f32 %v922, %v935
        %v937 = vpop.f32.mrf.mxu0
        %v938 = vadd.f32 %v924, %v937
        %939 = vdwg.mxu0
        %v940 = vpack.c.bf16 %v420, %v418
        %v941 = vpack.c.bf16 %v421, %v419
        %v942 = vld [vmem:[#allocation10] sm:$0xff]
        %v943 = vld [vmem:[#allocation10 + $0x8] sm:$0xff]
        %v944 = vld [vmem:[#allocation10 + $0x10] sm:$0xff]
        %v945 = vld [vmem:[#allocation10 + $0x18] sm:$0xff]
        %v946 = vld [vmem:[#allocation10 + $0x20] sm:$0xff]
        %v947 = vld [vmem:[#allocation10 + $0x28] sm:$0xff]
        %v948 = vld [vmem:[#allocation10 + $0x30] sm:$0xff]
        %v949 = vld [vmem:[#allocation10 + $0x38] sm:$0xff]
        %v950 = vld [vmem:[#allocation10 + $0x40] sm:$0xff]
        %v951 = vld [vmem:[#allocation10 + $0x48] sm:$0xff]
        %v952 = vld [vmem:[#allocation10 + $0x50] sm:$0xff]
        %v953 = vld [vmem:[#allocation10 + $0x58] sm:$0xff]
        %v954 = vld [vmem:[#allocation10 + $0x60] sm:$0xff]
        %v955 = vld [vmem:[#allocation10 + $0x68] sm:$0xff]
        %v956 = vld [vmem:[#allocation10 + $0x70] sm:$0xff]
        %v957 = vld [vmem:[#allocation10 + $0x78] sm:$0xff]
        %v958 = vld [vmem:[#allocation10 + $0x80] sm:$0xff]
        %v959 = vld [vmem:[#allocation10 + $0x88] sm:$0xff]
        %v960 = vld [vmem:[#allocation10 + $0x90] sm:$0xff]
        %v961 = vld [vmem:[#allocation10 + $0x98] sm:$0xff]
        %v962 = vld [vmem:[#allocation10 + $0xa0] sm:$0xff]
        %v963 = vld [vmem:[#allocation10 + $0xa8] sm:$0xff]
        %v964 = vld [vmem:[#allocation10 + $0xb0] sm:$0xff]
        %v965 = vld [vmem:[#allocation10 + $0xb8] sm:$0xff]
        %v966 = vld [vmem:[#allocation10 + $0xc0] sm:$0xff]
        %v967 = vld [vmem:[#allocation10 + $0xc8] sm:$0xff]
        %v968 = vld [vmem:[#allocation10 + $0xd0] sm:$0xff]
        %v969 = vld [vmem:[#allocation10 + $0xd8] sm:$0xff]
        %v970 = vld [vmem:[#allocation10 + $0xe0] sm:$0xff]
        %v971 = vld [vmem:[#allocation10 + $0xe8] sm:$0xff]
        %v972 = vld [vmem:[#allocation10 + $0xf0] sm:$0xff]
        %v973 = vld [vmem:[#allocation10 + $0xf8] sm:$0xff]
        %v975 = vperm.slane %v430, 0
        %v976 = vperm.slane %v430, 4
        %v979 = vperm.slane %v975, 0
        %v980 = vperm.slane %v976, 0
        %v1013 = vunpack.c.l.b16 %v942
        %v1014 = vunpack.c.h.b16 %v942
        %v1015 = vunpack.c.l.b16 %v943
        %v1016 = vunpack.c.h.b16 %v943
        %v1017 = vunpack.c.l.b16 %v944
        %v1018 = vunpack.c.h.b16 %v944
        %v1019 = vunpack.c.l.b16 %v945
        %v1020 = vunpack.c.h.b16 %v945
        %v1021 = vunpack.c.l.b16 %v946
        %v1022 = vunpack.c.h.b16 %v946
        %v1023 = vunpack.c.l.b16 %v947
        %v1024 = vunpack.c.h.b16 %v947
        %v1025 = vunpack.c.l.b16 %v948
        %v1026 = vunpack.c.h.b16 %v948
        %v1027 = vunpack.c.l.b16 %v949
        %v1028 = vunpack.c.h.b16 %v949
        %v1029 = vunpack.c.l.b16 %v950
        %v1030 = vunpack.c.h.b16 %v950
        %v1031 = vunpack.c.l.b16 %v951
        %v1032 = vunpack.c.h.b16 %v951
        %v1033 = vunpack.c.l.b16 %v952
        %v1034 = vunpack.c.h.b16 %v952
        %v1035 = vunpack.c.l.b16 %v953
        %v1036 = vunpack.c.h.b16 %v953
        %v1037 = vunpack.c.l.b16 %v954
        %v1038 = vunpack.c.h.b16 %v954
        %v1039 = vunpack.c.l.b16 %v955
        %v1040 = vunpack.c.h.b16 %v955
        %v1041 = vunpack.c.l.b16 %v956
        %v1042 = vunpack.c.h.b16 %v956
        %v1043 = vunpack.c.l.b16 %v957
        %v1044 = vunpack.c.h.b16 %v957
        %v1045 = vunpack.c.l.b16 %v958
        %v1046 = vunpack.c.h.b16 %v958
        %v1047 = vunpack.c.l.b16 %v959
        %v1048 = vunpack.c.h.b16 %v959
        %v1049 = vunpack.c.l.b16 %v960
        %v1050 = vunpack.c.h.b16 %v960
        %v1051 = vunpack.c.l.b16 %v961
        %v1052 = vunpack.c.h.b16 %v961
        %v1053 = vunpack.c.l.b16 %v962
        %v1054 = vunpack.c.h.b16 %v962
        %v1055 = vunpack.c.l.b16 %v963
        %v1056 = vunpack.c.h.b16 %v963
        %v1057 = vunpack.c.l.b16 %v964
        %v1058 = vunpack.c.h.b16 %v964
        %v1059 = vunpack.c.l.b16 %v965
        %v1060 = vunpack.c.h.b16 %v965
        %v1061 = vunpack.c.l.b16 %v966
        %v1062 = vunpack.c.h.b16 %v966
        %v1063 = vunpack.c.l.b16 %v967
        %v1064 = vunpack.c.h.b16 %v967
        %v1065 = vunpack.c.l.b16 %v968
        %v1066 = vunpack.c.h.b16 %v968
        %v1067 = vunpack.c.l.b16 %v969
        %v1068 = vunpack.c.h.b16 %v969
        %v1069 = vunpack.c.l.b16 %v970
        %v1070 = vunpack.c.h.b16 %v970
        %v1071 = vunpack.c.l.b16 %v971
        %v1072 = vunpack.c.h.b16 %v971
        %v1073 = vunpack.c.l.b16 %v972
        %v1074 = vunpack.c.h.b16 %v972
        %v1075 = vunpack.c.l.b16 %v973
        %v1076 = vunpack.c.h.b16 %v973
        %v1077 = vpack.c.b16 %v1015, %v1013
        %v1078 = vpack.c.b16 %v1016, %v1014
        %v1079 = vpack.c.b16 %v1019, %v1017
        %v1080 = vpack.c.b16 %v1020, %v1018
        %v1081 = vpack.c.b16 %v1023, %v1021
        %v1082 = vpack.c.b16 %v1024, %v1022
        %v1083 = vpack.c.b16 %v1027, %v1025
        %v1084 = vpack.c.b16 %v1028, %v1026
        %v1085 = vpack.c.b16 %v1031, %v1029
        %v1086 = vpack.c.b16 %v1032, %v1030
        %v1087 = vpack.c.b16 %v1035, %v1033
        %v1088 = vpack.c.b16 %v1036, %v1034
        %v1089 = vpack.c.b16 %v1039, %v1037
        %v1090 = vpack.c.b16 %v1040, %v1038
        %v1091 = vpack.c.b16 %v1043, %v1041
        %v1092 = vpack.c.b16 %v1044, %v1042
        %v1093 = vpack.c.b16 %v1047, %v1045
        %v1094 = vpack.c.b16 %v1048, %v1046
        %v1095 = vpack.c.b16 %v1051, %v1049
        %v1096 = vpack.c.b16 %v1052, %v1050
        %v1097 = vpack.c.b16 %v1055, %v1053
        %v1098 = vpack.c.b16 %v1056, %v1054
        %v1099 = vpack.c.b16 %v1059, %v1057
        %v1100 = vpack.c.b16 %v1060, %v1058
        %v1101 = vpack.c.b16 %v1063, %v1061
        %v1102 = vpack.c.b16 %v1064, %v1062
        %v1103 = vpack.c.b16 %v1067, %v1065
        %v1104 = vpack.c.b16 %v1068, %v1066
        %v1105 = vpack.c.b16 %v1071, %v1069
        %v1106 = vpack.c.b16 %v1072, %v1070
        %v1107 = vpack.c.b16 %v1075, %v1073
        %v1108 = vpack.c.b16 %v1076, %v1074
        %1141 = vmatpush.bf16.msra.mxu0 %v1091
        %1142 = vmatpush.bf16.msra.mxu0 %v1089
        %1143 = vmatpush.bf16.msra.mxu0 %v1087
        %1144 = vmatpush.bf16.msra.mxu0 %v1085
        %1145 = vmatpush.bf16.msra.mxu0 %v1083
        %1146 = vmatpush.bf16.msra.mxu0 %v1081
        %1147 = vmatpush.bf16.msra.mxu0 %v1079
        %1148 = vmatpush.bf16.msra.mxu0 %v1077
        %1149 = vmatmul.bf16.gmra.mxu0 %v940
        %v1150 = vpop.f32.mrf.mxu0
        %v1151 = vadd.f32 %v979, %v1150
        %v1152 = vpop.f32.mrf.mxu0
        %v1153 = vadd.f32 %v979, %v1152
        %1154 = vdwg.mxu0
        %1155 = vmatpush.bf16.msra.mxu0 %v1107
        %1156 = vmatpush.bf16.msra.mxu0 %v1105
        %1157 = vmatpush.bf16.msra.mxu0 %v1103
        %1158 = vmatpush.bf16.msra.mxu0 %v1101
        %1159 = vmatpush.bf16.msra.mxu0 %v1099
        %1160 = vmatpush.bf16.msra.mxu0 %v1097
        %1161 = vmatpush.bf16.msra.mxu0 %v1095
        %1162 = vmatpush.bf16.msra.mxu0 %v1093
        %1163 = vmatmul.bf16.gmra.mxu0 %v941
        %v1164 = vpop.f32.mrf.mxu0
        %v1165 = vadd.f32 %v1151, %v1164
        %v1166 = vpop.f32.mrf.mxu0
        %v1167 = vadd.f32 %v1153, %v1166
        %1168 = vdwg.mxu0
        %1169 = vmatpush.bf16.msra.mxu0 %v1092
        %1170 = vmatpush.bf16.msra.mxu0 %v1090
        %1171 = vmatpush.bf16.msra.mxu0 %v1088
        %1172 = vmatpush.bf16.msra.mxu0 %v1086
        %1173 = vmatpush.bf16.msra.mxu0 %v1084
        %1174 = vmatpush.bf16.msra.mxu0 %v1082
        %1175 = vmatpush.bf16.msra.mxu0 %v1080
        %1176 = vmatpush.bf16.msra.mxu0 %v1078
        %1177 = vmatmul.bf16.gmra.mxu0 %v940
        %v1178 = vpop.f32.mrf.mxu0
        %v1179 = vadd.f32 %v980, %v1178
        %v1180 = vpop.f32.mrf.mxu0
        %v1181 = vadd.f32 %v980, %v1180
        %1182 = vdwg.mxu0
        %1183 = vmatpush.bf16.msra.mxu0 %v1108
        %1184 = vmatpush.bf16.msra.mxu0 %v1106
        %1185 = vmatpush.bf16.msra.mxu0 %v1104
        %1186 = vmatpush.bf16.msra.mxu0 %v1102
        %1187 = vmatpush.bf16.msra.mxu0 %v1100
        %1188 = vmatpush.bf16.msra.mxu0 %v1098
        %1189 = vmatpush.bf16.msra.mxu0 %v1096
        %1190 = vmatpush.bf16.msra.mxu0 %v1094
        %1191 = vmatmul.bf16.gmra.mxu0 %v941
        %v1192 = vpop.f32.mrf.mxu0
        %v1193 = vadd.f32 %v1179, %v1192
        %v1194 = vpop.f32.mrf.mxu0
        %v1195 = vadd.f32 %v1181, %v1194
        %1196 = vdwg.mxu0
        %v1197 = vpack.c.bf16 %v854, %v852
        %v1198 = vpack.c.bf16 %v882, %v880
        %v1199 = vpack.c.bf16 %v910, %v908
        %v1200 = vpack.c.bf16 %v938, %v936
        %v1201 = vpack.c.bf16 %v1167, %v1165
        %v1202 = vpack.c.bf16 %v1195, %v1193
        %1203 = vmatpush.bf16.xpose.msra.mxu0 0
        %1204 = vmatpush.bf16.xpose.msra.mxu0 0
        %1205 = vmatpush.bf16.xpose.msra.mxu0 0
        %1206 = vmatpush.bf16.xpose.msra.mxu0 0
        %1207 = vmatpush.bf16.xpose.msra.mxu0 0
        %1208 = vmatpush.bf16.xpose.msra.mxu0 0
        %1209 = vmatpush.bf16.xpose.msra.mxu0 0
        %1210 = vmatpush.bf16.xpose.msra.mxu0 %v1199
        %1211 = vmatmul.bf16.gmra.mxu0 %v1197
        %v1212 = vpop.f32.mrf.mxu0
        %v1213 = vadd.f32 0.0, %v1212
        %v1214 = vpop.f32.mrf.mxu0
        %v1215 = vadd.f32 0.0, %v1214
        %1216 = vdwg.mxu0
        %1217 = vmatpush.bf16.xpose.msra.mxu0 0
        %1218 = vmatpush.bf16.xpose.msra.mxu0 0
        %1219 = vmatpush.bf16.xpose.msra.mxu0 0
        %1220 = vmatpush.bf16.xpose.msra.mxu0 0
        %1221 = vmatpush.bf16.xpose.msra.mxu0 0
        %1222 = vmatpush.bf16.xpose.msra.mxu0 0
        %1223 = vmatpush.bf16.xpose.msra.mxu0 0
        %1224 = vmatpush.bf16.xpose.msra.mxu0 %v1200
        %1225 = vmatmul.bf16.gmra.mxu0 %v1198
        %v1226 = vpop.f32.mrf.mxu0
        %v1227 = vadd.f32 %v1213, %v1226
        %v1228 = vpop.f32.mrf.mxu0
        %v1229 = vadd.f32 %v1215, %v1228
        %1230 = vdwg.mxu0
        %v1231 = vmul.f32 %v1227, 0.0625
        %v1232 = vmul.f32 %v1229, 0.0625
        %vm1233 = vcmask 130048
        %v1234 = vsel %vm1233, %v1231, -inf
        %1235 = vmax.xlane.f32.xlu0 %v1234
        %v1236 = vpop.xlane.xlu0 %1235
        %v1237 = vsel %vm1233, %v1232, -inf
        %1238 = vmax.xlane.f32.xlu0 %v1237
        %v1239 = vpop.xlane.xlu0 %1238
        %v1240 = vsub.f32 %v1231, %v1236
        %v1241 = vsub.f32 %v1232, %v1239
        %v1242 = vmul.f32 %v1240, 1.442695
        %v1243 = vpow.pop %v1242
        %v1244 = vmul.f32 %v1241, 1.442695
        %v1245 = vpow.pop %v1244
        %v1246 = vsel %vm1233, %v1243, 0.0
        %1247 = vadd.xlane.f32.xlu0 %v1246
        %v1248 = vpop.xlane.xlu0 %1247
        %v1249 = vsel %vm1233, %v1245, 0.0
        %1250 = vadd.xlane.f32.xlu0 %v1249
        %v1251 = vpop.xlane.xlu0 %1250
        %v1252 = vrcp.pop %v1248
        %v1253 = vmul.f32 %v1248, %v1252
        %v1254 = vsub.f32 1.0, %v1253
        %v1255 = vmul.f32 %v1252, %v1254
        %v1256 = vadd.f32 %v1252, %v1255
        %vm1257 = vweird.f32 %v1248
        %vm1258 = vweird.f32 %v1252
        %vm1259 = vmor %vm1257, %vm1258
        %v1260 = vsel %vm1259, %v1252, %v1256
        %v1261 = vand.u32 2147483647, %v1248
        %vm1262 = vcmp.eq.f32.partialorder %v1261, 8.507059e+37
        %v1263 = vand.u32 %v1248, 2147483648
        %v1264 = vor.u32 1.1754944e-38, %v1263
        %v1265 = vsel %vm1262, %v1264, %v1260
        %v1266 = vmul.f32 %v1243, %v1265
        %v1267 = vrcp.pop %v1251
        %v1268 = vmul.f32 %v1251, %v1267
        %v1269 = vsub.f32 1.0, %v1268
        %v1270 = vmul.f32 %v1267, %v1269
        %v1271 = vadd.f32 %v1267, %v1270
        %vm1272 = vweird.f32 %v1251
        %vm1273 = vweird.f32 %v1267
        %vm1274 = vmor %vm1272, %vm1273
        %v1275 = vsel %vm1274, %v1267, %v1271
        %v1276 = vand.u32 2147483647, %v1251
        %vm1277 = vcmp.eq.f32.partialorder %v1276, 8.507059e+37
        %v1278 = vand.u32 %v1251, 2147483648
        %v1279 = vor.u32 1.1754944e-38, %v1278
        %v1280 = vsel %vm1277, %v1279, %v1275
        %v1281 = vmul.f32 %v1245, %v1280
        %v1282 = vpack.c.bf16 %v1281, %v1266
        %v1284 = vsel %vm1233, %v1282, 0
        %1286 = vmatpush.bf16.msra.mxu0 0
        %1287 = vmatpush.bf16.msra.mxu0 0
        %1288 = vmatpush.bf16.msra.mxu0 0
        %1289 = vmatpush.bf16.msra.mxu0 0
        %1290 = vmatpush.bf16.msra.mxu0 0
        %1291 = vmatpush.bf16.msra.mxu0 0
        %1292 = vmatpush.bf16.msra.mxu0 0
        %1293 = vmatpush.bf16.msra.mxu0 %v1201
        %1294 = vmatmul.bf16.gmra.mxu0 %v1284
        %v1295 = vpop.f32.mrf.mxu0
        %v1296 = vadd.f32 0.0, %v1295
        %v1297 = vpop.f32.mrf.mxu0
        %v1298 = vadd.f32 0.0, %v1297
        %1299 = vdwg.mxu0
        %1300 = vmatpush.bf16.msra.mxu0 0
        %1301 = vmatpush.bf16.msra.mxu0 0
        %1302 = vmatpush.bf16.msra.mxu0 0
        %1303 = vmatpush.bf16.msra.mxu0 0
        %1304 = vmatpush.bf16.msra.mxu0 0
        %1305 = vmatpush.bf16.msra.mxu0 0
        %1306 = vmatpush.bf16.msra.mxu0 0
        %1307 = vmatpush.bf16.msra.mxu0 %v1202
        %1308 = vmatmul.bf16.gmra.mxu0 %v1284
        %v1309 = vpop.f32.mrf.mxu0
        %v1310 = vadd.f32 0.0, %v1309
        %v1311 = vpop.f32.mrf.mxu0
        %v1312 = vadd.f32 0.0, %v1311
        %1313 = vdwg.mxu0
        %v1314 = vpack.c.bf16 %v1298, %v1296
        %v1315 = vpack.c.bf16 %v1312, %v1310
        %s1316 = scalar_lea.vmem [#allocation10], 256
        %v1317 = vld [vmem:[%s1316] sm:$0xff]
        %v1318 = vld [vmem:[%s1316 + $0x8] sm:$0xff]
        %v1319 = vld [vmem:[%s1316 + $0x10] sm:$0xff]
        %v1320 = vld [vmem:[%s1316 + $0x18] sm:$0xff]
        %v1321 = vld [vmem:[%s1316 + $0x20] sm:$0xff]
        %v1322 = vld [vmem:[%s1316 + $0x28] sm:$0xff]
        %v1323 = vld [vmem:[%s1316 + $0x30] sm:$0xff]
        %v1324 = vld [vmem:[%s1316 + $0x38] sm:$0xff]
        %v1325 = vld [vmem:[%s1316 + $0x40] sm:$0xff]
        %v1326 = vld [vmem:[%s1316 + $0x48] sm:$0xff]
        %v1327 = vld [vmem:[%s1316 + $0x50] sm:$0xff]
        %v1328 = vld [vmem:[%s1316 + $0x58] sm:$0xff]
        %v1329 = vld [vmem:[%s1316 + $0x60] sm:$0xff]
        %v1330 = vld [vmem:[%s1316 + $0x68] sm:$0xff]
        %v1331 = vld [vmem:[%s1316 + $0x70] sm:$0xff]
        %v1332 = vld [vmem:[%s1316 + $0x78] sm:$0xff]
        %v1333 = vld [vmem:[%s1316 + $0x80] sm:$0xff]
        %v1334 = vld [vmem:[%s1316 + $0x88] sm:$0xff]
        %v1335 = vld [vmem:[%s1316 + $0x90] sm:$0xff]
        %v1336 = vld [vmem:[%s1316 + $0x98] sm:$0xff]
        %v1337 = vld [vmem:[%s1316 + $0xa0] sm:$0xff]
        %v1338 = vld [vmem:[%s1316 + $0xa8] sm:$0xff]
        %v1339 = vld [vmem:[%s1316 + $0xb0] sm:$0xff]
        %v1340 = vld [vmem:[%s1316 + $0xb8] sm:$0xff]
        %v1341 = vld [vmem:[%s1316 + $0xc0] sm:$0xff]
        %v1342 = vld [vmem:[%s1316 + $0xc8] sm:$0xff]
        %v1343 = vld [vmem:[%s1316 + $0xd0] sm:$0xff]
        %v1344 = vld [vmem:[%s1316 + $0xd8] sm:$0xff]
        %v1345 = vld [vmem:[%s1316 + $0xe0] sm:$0xff]
        %v1346 = vld [vmem:[%s1316 + $0xe8] sm:$0xff]
        %v1347 = vld [vmem:[%s1316 + $0xf0] sm:$0xff]
        %v1348 = vld [vmem:[%s1316 + $0xf8] sm:$0xff]
        %v1349 = vperm.slane %v430, 1
        %v1350 = vperm.slane %v430, 5
        %v1353 = vperm.slane %v1349, 1
        %v1354 = vperm.slane %v1350, 1
        %v1387 = vunpack.c.l.b16 %v1317
        %v1388 = vunpack.c.h.b16 %v1317
        %v1389 = vunpack.c.l.b16 %v1318
        %v1390 = vunpack.c.h.b16 %v1318
        %v1391 = vunpack.c.l.b16 %v1319
        %v1392 = vunpack.c.h.b16 %v1319
        %v1393 = vunpack.c.l.b16 %v1320
        %v1394 = vunpack.c.h.b16 %v1320
        %v1395 = vunpack.c.l.b16 %v1321
        %v1396 = vunpack.c.h.b16 %v1321
        %v1397 = vunpack.c.l.b16 %v1322
        %v1398 = vunpack.c.h.b16 %v1322
        %v1399 = vunpack.c.l.b16 %v1323
        %v1400 = vunpack.c.h.b16 %v1323
        %v1401 = vunpack.c.l.b16 %v1324
        %v1402 = vunpack.c.h.b16 %v1324
        %v1403 = vunpack.c.l.b16 %v1325
        %v1404 = vunpack.c.h.b16 %v1325
        %v1405 = vunpack.c.l.b16 %v1326
        %v1406 = vunpack.c.h.b16 %v1326
        %v1407 = vunpack.c.l.b16 %v1327
        %v1408 = vunpack.c.h.b16 %v1327
        %v1409 = vunpack.c.l.b16 %v1328
        %v1410 = vunpack.c.h.b16 %v1328
        %v1411 = vunpack.c.l.b16 %v1329
        %v1412 = vunpack.c.h.b16 %v1329
        %v1413 = vunpack.c.l.b16 %v1330
        %v1414 = vunpack.c.h.b16 %v1330
        %v1415 = vunpack.c.l.b16 %v1331
        %v1416 = vunpack.c.h.b16 %v1331
        %v1417 = vunpack.c.l.b16 %v1332
        %v1418 = vunpack.c.h.b16 %v1332
        %v1419 = vunpack.c.l.b16 %v1333
        %v1420 = vunpack.c.h.b16 %v1333
        %v1421 = vunpack.c.l.b16 %v1334
        %v1422 = vunpack.c.h.b16 %v1334
        %v1423 = vunpack.c.l.b16 %v1335
        %v1424 = vunpack.c.h.b16 %v1335
        %v1425 = vunpack.c.l.b16 %v1336
        %v1426 = vunpack.c.h.b16 %v1336
        %v1427 = vunpack.c.l.b16 %v1337
        %v1428 = vunpack.c.h.b16 %v1337
        %v1429 = vunpack.c.l.b16 %v1338
        %v1430 = vunpack.c.h.b16 %v1338
        %v1431 = vunpack.c.l.b16 %v1339
        %v1432 = vunpack.c.h.b16 %v1339
        %v1433 = vunpack.c.l.b16 %v1340
        %v1434 = vunpack.c.h.b16 %v1340
        %v1435 = vunpack.c.l.b16 %v1341
        %v1436 = vunpack.c.h.b16 %v1341
        %v1437 = vunpack.c.l.b16 %v1342
        %v1438 = vunpack.c.h.b16 %v1342
        %v1439 = vunpack.c.l.b16 %v1343
        %v1440 = vunpack.c.h.b16 %v1343
        %v1441 = vunpack.c.l.b16 %v1344
        %v1442 = vunpack.c.h.b16 %v1344
        %v1443 = vunpack.c.l.b16 %v1345
        %v1444 = vunpack.c.h.b16 %v1345
        %v1445 = vunpack.c.l.b16 %v1346
        %v1446 = vunpack.c.h.b16 %v1346
        %v1447 = vunpack.c.l.b16 %v1347
        %v1448 = vunpack.c.h.b16 %v1347
        %v1449 = vunpack.c.l.b16 %v1348
        %v1450 = vunpack.c.h.b16 %v1348
        %v1451 = vpack.c.b16 %v1389, %v1387
        %v1452 = vpack.c.b16 %v1390, %v1388
        %v1453 = vpack.c.b16 %v1393, %v1391
        %v1454 = vpack.c.b16 %v1394, %v1392
        %v1455 = vpack.c.b16 %v1397, %v1395
        %v1456 = vpack.c.b16 %v1398, %v1396
        %v1457 = vpack.c.b16 %v1401, %v1399
        %v1458 = vpack.c.b16 %v1402, %v1400
        %v1459 = vpack.c.b16 %v1405, %v1403
        %v1460 = vpack.c.b16 %v1406, %v1404
        %v1461 = vpack.c.b16 %v1409, %v1407
        %v1462 = vpack.c.b16 %v1410, %v1408
        %v1463 = vpack.c.b16 %v1413, %v1411
        %v1464 = vpack.c.b16 %v1414, %v1412
        %v1465 = vpack.c.b16 %v1417, %v1415
        %v1466 = vpack.c.b16 %v1418, %v1416
        %v1467 = vpack.c.b16 %v1421, %v1419
        %v1468 = vpack.c.b16 %v1422, %v1420
        %v1469 = vpack.c.b16 %v1425, %v1423
        %v1470 = vpack.c.b16 %v1426, %v1424
        %v1471 = vpack.c.b16 %v1429, %v1427
        %v1472 = vpack.c.b16 %v1430, %v1428
        %v1473 = vpack.c.b16 %v1433, %v1431
        %v1474 = vpack.c.b16 %v1434, %v1432
        %v1475 = vpack.c.b16 %v1437, %v1435
        %v1476 = vpack.c.b16 %v1438, %v1436
        %v1477 = vpack.c.b16 %v1441, %v1439
        %v1478 = vpack.c.b16 %v1442, %v1440
        %v1479 = vpack.c.b16 %v1445, %v1443
        %v1480 = vpack.c.b16 %v1446, %v1444
        %v1481 = vpack.c.b16 %v1449, %v1447
        %v1482 = vpack.c.b16 %v1450, %v1448
        %1515 = vmatpush.bf16.msra.mxu0 %v1465
        %1516 = vmatpush.bf16.msra.mxu0 %v1463
        %1517 = vmatpush.bf16.msra.mxu0 %v1461
        %1518 = vmatpush.bf16.msra.mxu0 %v1459
        %1519 = vmatpush.bf16.msra.mxu0 %v1457
        %1520 = vmatpush.bf16.msra.mxu0 %v1455
        %1521 = vmatpush.bf16.msra.mxu0 %v1453
        %1522 = vmatpush.bf16.msra.mxu0 %v1451
        %1523 = vmatmul.bf16.gmra.mxu0 %v1314
        %v1524 = vpop.f32.mrf.mxu0
        %v1525 = vadd.f32 %v1353, %v1524
        %v1526 = vpop.f32.mrf.mxu0
        %v1527 = vadd.f32 %v1353, %v1526
        %1528 = vdwg.mxu0
        %1529 = vmatpush.bf16.msra.mxu0 %v1481
        %1530 = vmatpush.bf16.msra.mxu0 %v1479
        %1531 = vmatpush.bf16.msra.mxu0 %v1477
        %1532 = vmatpush.bf16.msra.mxu0 %v1475
        %1533 = vmatpush.bf16.msra.mxu0 %v1473
        %1534 = vmatpush.bf16.msra.mxu0 %v1471
        %1535 = vmatpush.bf16.msra.mxu0 %v1469
        %1536 = vmatpush.bf16.msra.mxu0 %v1467
        %1537 = vmatmul.bf16.gmra.mxu0 %v1315
        %v1538 = vpop.f32.mrf.mxu0
        %v1539 = vadd.f32 %v1525, %v1538
        %v1540 = vpop.f32.mrf.mxu0
        %v1541 = vadd.f32 %v1527, %v1540
        %1542 = vdwg.mxu0
        %1543 = vmatpush.bf16.msra.mxu0 %v1466
        %1544 = vmatpush.bf16.msra.mxu0 %v1464
        %1545 = vmatpush.bf16.msra.mxu0 %v1462
        %1546 = vmatpush.bf16.msra.mxu0 %v1460
        %1547 = vmatpush.bf16.msra.mxu0 %v1458
        %1548 = vmatpush.bf16.msra.mxu0 %v1456
        %1549 = vmatpush.bf16.msra.mxu0 %v1454
        %1550 = vmatpush.bf16.msra.mxu0 %v1452
        %1551 = vmatmul.bf16.gmra.mxu0 %v1314
        %v1552 = vpop.f32.mrf.mxu0
        %v1553 = vadd.f32 %v1354, %v1552
        %v1554 = vpop.f32.mrf.mxu0
        %v1555 = vadd.f32 %v1354, %v1554
        %1556 = vdwg.mxu0
        %1557 = vmatpush.bf16.msra.mxu0 %v1482
        %1558 = vmatpush.bf16.msra.mxu0 %v1480
        %1559 = vmatpush.bf16.msra.mxu0 %v1478
        %1560 = vmatpush.bf16.msra.mxu0 %v1476
        %1561 = vmatpush.bf16.msra.mxu0 %v1474
        %1562 = vmatpush.bf16.msra.mxu0 %v1472
        %1563 = vmatpush.bf16.msra.mxu0 %v1470
        %1564 = vmatpush.bf16.msra.mxu0 %v1468
        %1565 = vmatmul.bf16.gmra.mxu0 %v1315
        %v1566 = vpop.f32.mrf.mxu0
        %v1567 = vadd.f32 %v1553, %v1566
        %v1568 = vpop.f32.mrf.mxu0
        %v1569 = vadd.f32 %v1555, %v1568
        %1570 = vdwg.mxu0
        %v1571 = vadd.f32 %v418, %v1539
        %v1572 = vadd.f32 %v419, %v1567
        %v1573 = vadd.f32 %v420, %v1541
        %v1574 = vadd.f32 %v421, %v1569
        %v1575 = vadd.f32 %v1571, %v1572
        %1576 = vadd.xlane.f32.xlu0 %v1575
        %v1577 = vpop.xlane.xlu0 %1576
        %v1578 = vadd.f32 %v1573, %v1574
        %1579 = vadd.xlane.f32.xlu0 %v1578
        %v1580 = vpop.xlane.xlu0 %1579
        %v1581 = vrcp.pop 256.0
        %v1582 = vmul.f32 256.0, %v1581
        %v1583 = vsub.f32 1.0, %v1582
        %v1584 = vmul.f32 %v1581, %v1583
        %v1585 = vadd.f32 %v1581, %v1584
        %vm1586 = vweird.f32 %v1581
        %v1587 = vsel %vm1586, %v1581, %v1585
        %v1588 = vmul.f32 %v1577, %v1587
        %v1589 = vmul.f32 %v1580, %v1587
        %v1590 = vsub.f32 %v1571, %v1588
        %v1591 = vsub.f32 %v1572, %v1588
        %v1592 = vsub.f32 %v1573, %v1589
        %v1593 = vsub.f32 %v1574, %v1589
        %v1594 = vmul.f32 %v1590, %v1590
        %v1595 = vmul.f32 %v1591, %v1591
        %v1596 = vmul.f32 %v1592, %v1592
        %v1597 = vmul.f32 %v1593, %v1593
        %v1598 = vadd.f32 %v1594, %v1595
        %1599 = vadd.xlane.f32.xlu0 %v1598
        %v1600 = vpop.xlane.xlu0 %1599
        %v1601 = vadd.f32 %v1596, %v1597
        %1602 = vadd.xlane.f32.xlu0 %v1601
        %v1603 = vpop.xlane.xlu0 %1602
        %v1604 = vmul.f32 %v1600, %v1587
        %v1605 = vmul.f32 %v1603, %v1587
        %v1606 = vadd.f32 %v1604, 1e-05
        %v1607 = vadd.f32 %v1605, 1e-05
        %v1608 = vrsqrt.pop %v1606
        %v1609 = vmul.f32 %v1608, %v1606
        %v1610 = vmul.f32 %v1609, %v1608
        %v1611 = vmul.f32 0.5, %v1610
        %v1612 = vsub.f32 1.5, %v1611
        %v1613 = vmul.f32 %v1608, %v1612
        %vm1614 = vweird.f32 %v1606
        %vm1615 = vweird.f32 %v1608
        %vm1616 = vmor %vm1614, %vm1615
        %v1617 = vsel %vm1616, %v1608, %v1613
        %v1618 = vrsqrt.pop %v1607
        %v1619 = vmul.f32 %v1618, %v1607
        %v1620 = vmul.f32 %v1619, %v1618
        %v1621 = vmul.f32 0.5, %v1620
        %v1622 = vsub.f32 1.5, %v1621
        %v1623 = vmul.f32 %v1618, %v1622
        %vm1624 = vweird.f32 %v1607
        %vm1625 = vweird.f32 %v1618
        %vm1626 = vmor %vm1624, %vm1625
        %v1627 = vsel %vm1626, %v1618, %v1623
        %v1628 = vmul.f32 %v1590, %v1617
        %v1629 = vmul.f32 %v1591, %v1617
        %v1630 = vmul.f32 %v1592, %v1627
        %v1631 = vmul.f32 %v1593, %v1627
        %v1633 = vperm.slane %v431, 0
        %v1634 = vperm.slane %v431, 4
        %v1637 = vperm.slane %v1633, 0
        %v1638 = vperm.slane %v1634, 0
        %v1639 = vmul.f32 %v1628, %v1637
        %v1640 = vmul.f32 %v1629, %v1638
        %v1641 = vmul.f32 %v1630, %v1637
        %v1642 = vmul.f32 %v1631, %v1638
        %v1643 = vperm.slane %v431, 1
        %v1644 = vperm.slane %v431, 5
        %v1647 = vperm.slane %v1643, 1
        %v1648 = vperm.slane %v1644, 1
        %v1649 = vadd.f32 %v1639, %v1647
        %v1650 = vadd.f32 %v1640, %v1648
        %v1651 = vadd.f32 %v1641, %v1647
        %v1652 = vadd.f32 %v1642, %v1648
        %v1653 = vpack.c.bf16 %v1651, %v1649
        %v1654 = vpack.c.bf16 %v1652, %v1650
        %s1655 = scalar_lea.vmem [#allocation10], 512
        %v1656 = vld [vmem:[%s1655] sm:$0xff]
        %v1657 = vld [vmem:[%s1655 + $0x8] sm:$0xff]
        %v1658 = vld [vmem:[%s1655 + $0x10] sm:$0xff]
        %v1659 = vld [vmem:[%s1655 + $0x18] sm:$0xff]
        %v1660 = vld [vmem:[%s1655 + $0x20] sm:$0xff]
        %v1661 = vld [vmem:[%s1655 + $0x28] sm:$0xff]
        %v1662 = vld [vmem:[%s1655 + $0x30] sm:$0xff]
        %v1663 = vld [vmem:[%s1655 + $0x38] sm:$0xff]
        %v1664 = vld [vmem:[%s1655 + $0x40] sm:$0xff]
        %v1665 = vld [vmem:[%s1655 + $0x48] sm:$0xff]
        %v1666 = vld [vmem:[%s1655 + $0x50] sm:$0xff]
        %v1667 = vld [vmem:[%s1655 + $0x58] sm:$0xff]
        %v1668 = vld [vmem:[%s1655 + $0x60] sm:$0xff]
        %v1669 = vld [vmem:[%s1655 + $0x68] sm:$0xff]
        %v1670 = vld [vmem:[%s1655 + $0x70] sm:$0xff]
        %v1671 = vld [vmem:[%s1655 + $0x78] sm:$0xff]
        %v1672 = vld [vmem:[%s1655 + $0x80] sm:$0xff]
        %v1673 = vld [vmem:[%s1655 + $0x88] sm:$0xff]
        %v1674 = vld [vmem:[%s1655 + $0x90] sm:$0xff]
        %v1675 = vld [vmem:[%s1655 + $0x98] sm:$0xff]
        %v1676 = vld [vmem:[%s1655 + $0xa0] sm:$0xff]
        %v1677 = vld [vmem:[%s1655 + $0xa8] sm:$0xff]
        %v1678 = vld [vmem:[%s1655 + $0xb0] sm:$0xff]
        %v1679 = vld [vmem:[%s1655 + $0xb8] sm:$0xff]
        %v1680 = vld [vmem:[%s1655 + $0xc0] sm:$0xff]
        %v1681 = vld [vmem:[%s1655 + $0xc8] sm:$0xff]
        %v1682 = vld [vmem:[%s1655 + $0xd0] sm:$0xff]
        %v1683 = vld [vmem:[%s1655 + $0xd8] sm:$0xff]
        %v1684 = vld [vmem:[%s1655 + $0xe0] sm:$0xff]
        %v1685 = vld [vmem:[%s1655 + $0xe8] sm:$0xff]
        %v1686 = vld [vmem:[%s1655 + $0xf0] sm:$0xff]
        %v1687 = vld [vmem:[%s1655 + $0xf8] sm:$0xff]
        %v1688 = vperm.slane %v430, 2
        %v1689 = vperm.slane %v430, 6
        %v1692 = vperm.slane %v1688, 2
        %v1693 = vperm.slane %v1689, 2
        %v1726 = vunpack.c.l.b16 %v1656
        %v1727 = vunpack.c.h.b16 %v1656
        %v1728 = vunpack.c.l.b16 %v1657
        %v1729 = vunpack.c.h.b16 %v1657
        %v1730 = vunpack.c.l.b16 %v1658
        %v1731 = vunpack.c.h.b16 %v1658
        %v1732 = vunpack.c.l.b16 %v1659
        %v1733 = vunpack.c.h.b16 %v1659
        %v1734 = vunpack.c.l.b16 %v1660
        %v1735 = vunpack.c.h.b16 %v1660
        %v1736 = vunpack.c.l.b16 %v1661
        %v1737 = vunpack.c.h.b16 %v1661
        %v1738 = vunpack.c.l.b16 %v1662
        %v1739 = vunpack.c.h.b16 %v1662
        %v1740 = vunpack.c.l.b16 %v1663
        %v1741 = vunpack.c.h.b16 %v1663
        %v1742 = vunpack.c.l.b16 %v1664
        %v1743 = vunpack.c.h.b16 %v1664
        %v1744 = vunpack.c.l.b16 %v1665
        %v1745 = vunpack.c.h.b16 %v1665
        %v1746 = vunpack.c.l.b16 %v1666
        %v1747 = vunpack.c.h.b16 %v1666
        %v1748 = vunpack.c.l.b16 %v1667
        %v1749 = vunpack.c.h.b16 %v1667
        %v1750 = vunpack.c.l.b16 %v1668
        %v1751 = vunpack.c.h.b16 %v1668
        %v1752 = vunpack.c.l.b16 %v1669
        %v1753 = vunpack.c.h.b16 %v1669
        %v1754 = vunpack.c.l.b16 %v1670
        %v1755 = vunpack.c.h.b16 %v1670
        %v1756 = vunpack.c.l.b16 %v1671
        %v1757 = vunpack.c.h.b16 %v1671
        %v1758 = vunpack.c.l.b16 %v1672
        %v1759 = vunpack.c.h.b16 %v1672
        %v1760 = vunpack.c.l.b16 %v1673
        %v1761 = vunpack.c.h.b16 %v1673
        %v1762 = vunpack.c.l.b16 %v1674
        %v1763 = vunpack.c.h.b16 %v1674
        %v1764 = vunpack.c.l.b16 %v1675
        %v1765 = vunpack.c.h.b16 %v1675
        %v1766 = vunpack.c.l.b16 %v1676
        %v1767 = vunpack.c.h.b16 %v1676
        %v1768 = vunpack.c.l.b16 %v1677
        %v1769 = vunpack.c.h.b16 %v1677
        %v1770 = vunpack.c.l.b16 %v1678
        %v1771 = vunpack.c.h.b16 %v1678
        %v1772 = vunpack.c.l.b16 %v1679
        %v1773 = vunpack.c.h.b16 %v1679
        %v1774 = vunpack.c.l.b16 %v1680
        %v1775 = vunpack.c.h.b16 %v1680
        %v1776 = vunpack.c.l.b16 %v1681
        %v1777 = vunpack.c.h.b16 %v1681
        %v1778 = vunpack.c.l.b16 %v1682
        %v1779 = vunpack.c.h.b16 %v1682
        %v1780 = vunpack.c.l.b16 %v1683
        %v1781 = vunpack.c.h.b16 %v1683
        %v1782 = vunpack.c.l.b16 %v1684
        %v1783 = vunpack.c.h.b16 %v1684
        %v1784 = vunpack.c.l.b16 %v1685
        %v1785 = vunpack.c.h.b16 %v1685
        %v1786 = vunpack.c.l.b16 %v1686
        %v1787 = vunpack.c.h.b16 %v1686
        %v1788 = vunpack.c.l.b16 %v1687
        %v1789 = vunpack.c.h.b16 %v1687
        %v1790 = vpack.c.b16 %v1728, %v1726
        %v1791 = vpack.c.b16 %v1729, %v1727
        %v1792 = vpack.c.b16 %v1732, %v1730
        %v1793 = vpack.c.b16 %v1733, %v1731
        %v1794 = vpack.c.b16 %v1736, %v1734
        %v1795 = vpack.c.b16 %v1737, %v1735
        %v1796 = vpack.c.b16 %v1740, %v1738
        %v1797 = vpack.c.b16 %v1741, %v1739
        %v1798 = vpack.c.b16 %v1744, %v1742
        %v1799 = vpack.c.b16 %v1745, %v1743
        %v1800 = vpack.c.b16 %v1748, %v1746
        %v1801 = vpack.c.b16 %v1749, %v1747
        %v1802 = vpack.c.b16 %v1752, %v1750
        %v1803 = vpack.c.b16 %v1753, %v1751
        %v1804 = vpack.c.b16 %v1756, %v1754
        %v1805 = vpack.c.b16 %v1757, %v1755
        %v1806 = vpack.c.b16 %v1760, %v1758
        %v1807 = vpack.c.b16 %v1761, %v1759
        %v1808 = vpack.c.b16 %v1764, %v1762
        %v1809 = vpack.c.b16 %v1765, %v1763
        %v1810 = vpack.c.b16 %v1768, %v1766
        %v1811 = vpack.c.b16 %v1769, %v1767
        %v1812 = vpack.c.b16 %v1772, %v1770
        %v1813 = vpack.c.b16 %v1773, %v1771
        %v1814 = vpack.c.b16 %v1776, %v1774
        %v1815 = vpack.c.b16 %v1777, %v1775
        %v1816 = vpack.c.b16 %v1780, %v1778
        %v1817 = vpack.c.b16 %v1781, %v1779
        %v1818 = vpack.c.b16 %v1784, %v1782
        %v1819 = vpack.c.b16 %v1785, %v1783
        %v1820 = vpack.c.b16 %v1788, %v1786
        %v1821 = vpack.c.b16 %v1789, %v1787
        %1854 = vmatpush.bf16.msra.mxu0 %v1804
        %1855 = vmatpush.bf16.msra.mxu0 %v1802
        %1856 = vmatpush.bf16.msra.mxu0 %v1800
        %1857 = vmatpush.bf16.msra.mxu0 %v1798
        %1858 = vmatpush.bf16.msra.mxu0 %v1796
        %1859 = vmatpush.bf16.msra.mxu0 %v1794
        %1860 = vmatpush.bf16.msra.mxu0 %v1792
        %1861 = vmatpush.bf16.msra.mxu0 %v1790
        %1862 = vmatmul.bf16.gmra.mxu0 %v1653
        %v1863 = vpop.f32.mrf.mxu0
        %v1864 = vadd.f32 %v1692, %v1863
        %v1865 = vpop.f32.mrf.mxu0
        %v1866 = vadd.f32 %v1692, %v1865
        %1867 = vdwg.mxu0
        %1868 = vmatpush.bf16.msra.mxu0 %v1820
        %1869 = vmatpush.bf16.msra.mxu0 %v1818
        %1870 = vmatpush.bf16.msra.mxu0 %v1816
        %1871 = vmatpush.bf16.msra.mxu0 %v1814
        %1872 = vmatpush.bf16.msra.mxu0 %v1812
        %1873 = vmatpush.bf16.msra.mxu0 %v1810
        %1874 = vmatpush.bf16.msra.mxu0 %v1808
        %1875 = vmatpush.bf16.msra.mxu0 %v1806
        %1876 = vmatmul.bf16.gmra.mxu0 %v1654
        %v1877 = vpop.f32.mrf.mxu0
        %v1878 = vadd.f32 %v1864, %v1877
        %v1879 = vpop.f32.mrf.mxu0
        %v1880 = vadd.f32 %v1866, %v1879
        %1881 = vdwg.mxu0
        %1882 = vmatpush.bf16.msra.mxu0 %v1805
        %1883 = vmatpush.bf16.msra.mxu0 %v1803
        %1884 = vmatpush.bf16.msra.mxu0 %v1801
        %1885 = vmatpush.bf16.msra.mxu0 %v1799
        %1886 = vmatpush.bf16.msra.mxu0 %v1797
        %1887 = vmatpush.bf16.msra.mxu0 %v1795
        %1888 = vmatpush.bf16.msra.mxu0 %v1793
        %1889 = vmatpush.bf16.msra.mxu0 %v1791
        %1890 = vmatmul.bf16.gmra.mxu0 %v1653
        %v1891 = vpop.f32.mrf.mxu0
        %v1892 = vadd.f32 %v1693, %v1891
        %v1893 = vpop.f32.mrf.mxu0
        %v1894 = vadd.f32 %v1693, %v1893
        %1895 = vdwg.mxu0
        %1896 = vmatpush.bf16.msra.mxu0 %v1821
        %1897 = vmatpush.bf16.msra.mxu0 %v1819
        %1898 = vmatpush.bf16.msra.mxu0 %v1817
        %1899 = vmatpush.bf16.msra.mxu0 %v1815
        %1900 = vmatpush.bf16.msra.mxu0 %v1813
        %1901 = vmatpush.bf16.msra.mxu0 %v1811
        %1902 = vmatpush.bf16.msra.mxu0 %v1809
        %1903 = vmatpush.bf16.msra.mxu0 %v1807
        %1904 = vmatmul.bf16.gmra.mxu0 %v1654
        %v1905 = vpop.f32.mrf.mxu0
        %v1906 = vadd.f32 %v1892, %v1905
        %v1907 = vpop.f32.mrf.mxu0
        %v1908 = vadd.f32 %v1894, %v1907
        %1909 = vdwg.mxu0
        %v1910 = vmax.f32 %v1878, 0.0
        %v1911 = vmax.f32 %v1906, 0.0
        %v1912 = vmax.f32 %v1880, 0.0
        %v1913 = vmax.f32 %v1908, 0.0
        %v1914 = vpack.c.bf16 %v1912, %v1910
        %v1915 = vpack.c.bf16 %v1913, %v1911
        %s1916 = scalar_lea.vmem [#allocation10], 768
        %v1917 = vld [vmem:[%s1916] sm:$0xff]
        %v1918 = vld [vmem:[%s1916 + $0x8] sm:$0xff]
        %v1919 = vld [vmem:[%s1916 + $0x10] sm:$0xff]
        %v1920 = vld [vmem:[%s1916 + $0x18] sm:$0xff]
        %v1921 = vld [vmem:[%s1916 + $0x20] sm:$0xff]
        %v1922 = vld [vmem:[%s1916 + $0x28] sm:$0xff]
        %v1923 = vld [vmem:[%s1916 + $0x30] sm:$0xff]
        %v1924 = vld [vmem:[%s1916 + $0x38] sm:$0xff]
        %v1925 = vld [vmem:[%s1916 + $0x40] sm:$0xff]
        %v1926 = vld [vmem:[%s1916 + $0x48] sm:$0xff]
        %v1927 = vld [vmem:[%s1916 + $0x50] sm:$0xff]
        %v1928 = vld [vmem:[%s1916 + $0x58] sm:$0xff]
        %v1929 = vld [vmem:[%s1916 + $0x60] sm:$0xff]
        %v1930 = vld [vmem:[%s1916 + $0x68] sm:$0xff]
        %v1931 = vld [vmem:[%s1916 + $0x70] sm:$0xff]
        %v1932 = vld [vmem:[%s1916 + $0x78] sm:$0xff]
        %v1933 = vld [vmem:[%s1916 + $0x80] sm:$0xff]
        %v1934 = vld [vmem:[%s1916 + $0x88] sm:$0xff]
        %v1935 = vld [vmem:[%s1916 + $0x90] sm:$0xff]
        %v1936 = vld [vmem:[%s1916 + $0x98] sm:$0xff]
        %v1937 = vld [vmem:[%s1916 + $0xa0] sm:$0xff]
        %v1938 = vld [vmem:[%s1916 + $0xa8] sm:$0xff]
        %v1939 = vld [vmem:[%s1916 + $0xb0] sm:$0xff]
        %v1940 = vld [vmem:[%s1916 + $0xb8] sm:$0xff]
        %v1941 = vld [vmem:[%s1916 + $0xc0] sm:$0xff]
        %v1942 = vld [vmem:[%s1916 + $0xc8] sm:$0xff]
        %v1943 = vld [vmem:[%s1916 + $0xd0] sm:$0xff]
        %v1944 = vld [vmem:[%s1916 + $0xd8] sm:$0xff]
        %v1945 = vld [vmem:[%s1916 + $0xe0] sm:$0xff]
        %v1946 = vld [vmem:[%s1916 + $0xe8] sm:$0xff]
        %v1947 = vld [vmem:[%s1916 + $0xf0] sm:$0xff]
        %v1948 = vld [vmem:[%s1916 + $0xf8] sm:$0xff]
        %v1949 = vperm.slane %v430, 3
        %v1950 = vperm.slane %v430, 7
        %v1953 = vperm.slane %v1949, 3
        %v1954 = vperm.slane %v1950, 3
        %v1987 = vunpack.c.l.b16 %v1917
        %v1988 = vunpack.c.h.b16 %v1917
        %v1989 = vunpack.c.l.b16 %v1918
        %v1990 = vunpack.c.h.b16 %v1918
        %v1991 = vunpack.c.l.b16 %v1919
        %v1992 = vunpack.c.h.b16 %v1919
        %v1993 = vunpack.c.l.b16 %v1920
        %v1994 = vunpack.c.h.b16 %v1920
        %v1995 = vunpack.c.l.b16 %v1921
        %v1996 = vunpack.c.h.b16 %v1921
        %v1997 = vunpack.c.l.b16 %v1922
        %v1998 = vunpack.c.h.b16 %v1922
        %v1999 = vunpack.c.l.b16 %v1923
        %v2000 = vunpack.c.h.b16 %v1923
        %v2001 = vunpack.c.l.b16 %v1924
        %v2002 = vunpack.c.h.b16 %v1924
        %v2003 = vunpack.c.l.b16 %v1925
        %v2004 = vunpack.c.h.b16 %v1925
        %v2005 = vunpack.c.l.b16 %v1926
        %v2006 = vunpack.c.h.b16 %v1926
        %v2007 = vunpack.c.l.b16 %v1927
        %v2008 = vunpack.c.h.b16 %v1927
        %v2009 = vunpack.c.l.b16 %v1928
        %v2010 = vunpack.c.h.b16 %v1928
        %v2011 = vunpack.c.l.b16 %v1929
        %v2012 = vunpack.c.h.b16 %v1929
        %v2013 = vunpack.c.l.b16 %v1930
        %v2014 = vunpack.c.h.b16 %v1930
        %v2015 = vunpack.c.l.b16 %v1931
        %v2016 = vunpack.c.h.b16 %v1931
        %v2017 = vunpack.c.l.b16 %v1932
        %v2018 = vunpack.c.h.b16 %v1932
        %v2019 = vunpack.c.l.b16 %v1933
        %v2020 = vunpack.c.h.b16 %v1933
        %v2021 = vunpack.c.l.b16 %v1934
        %v2022 = vunpack.c.h.b16 %v1934
        %v2023 = vunpack.c.l.b16 %v1935
        %v2024 = vunpack.c.h.b16 %v1935
        %v2025 = vunpack.c.l.b16 %v1936
        %v2026 = vunpack.c.h.b16 %v1936
        %v2027 = vunpack.c.l.b16 %v1937
        %v2028 = vunpack.c.h.b16 %v1937
        %v2029 = vunpack.c.l.b16 %v1938
        %v2030 = vunpack.c.h.b16 %v1938
        %v2031 = vunpack.c.l.b16 %v1939
        %v2032 = vunpack.c.h.b16 %v1939
        %v2033 = vunpack.c.l.b16 %v1940
        %v2034 = vunpack.c.h.b16 %v1940
        %v2035 = vunpack.c.l.b16 %v1941
        %v2036 = vunpack.c.h.b16 %v1941
        %v2037 = vunpack.c.l.b16 %v1942
        %v2038 = vunpack.c.h.b16 %v1942
        %v2039 = vunpack.c.l.b16 %v1943
        %v2040 = vunpack.c.h.b16 %v1943
        %v2041 = vunpack.c.l.b16 %v1944
        %v2042 = vunpack.c.h.b16 %v1944
        %v2043 = vunpack.c.l.b16 %v1945
        %v2044 = vunpack.c.h.b16 %v1945
        %v2045 = vunpack.c.l.b16 %v1946
        %v2046 = vunpack.c.h.b16 %v1946
        %v2047 = vunpack.c.l.b16 %v1947
        %v2048 = vunpack.c.h.b16 %v1947
        %v2049 = vunpack.c.l.b16 %v1948
        %v2050 = vunpack.c.h.b16 %v1948
        %v2051 = vpack.c.b16 %v1989, %v1987
        %v2052 = vpack.c.b16 %v1990, %v1988
        %v2053 = vpack.c.b16 %v1993, %v1991
        %v2054 = vpack.c.b16 %v1994, %v1992
        %v2055 = vpack.c.b16 %v1997, %v1995
        %v2056 = vpack.c.b16 %v1998, %v1996
        %v2057 = vpack.c.b16 %v2001, %v1999
        %v2058 = vpack.c.b16 %v2002, %v2000
        %v2059 = vpack.c.b16 %v2005, %v2003
        %v2060 = vpack.c.b16 %v2006, %v2004
        %v2061 = vpack.c.b16 %v2009, %v2007
        %v2062 = vpack.c.b16 %v2010, %v2008
        %v2063 = vpack.c.b16 %v2013, %v2011
        %v2064 = vpack.c.b16 %v2014, %v2012
        %v2065 = vpack.c.b16 %v2017, %v2015
        %v2066 = vpack.c.b16 %v2018, %v2016
        %v2067 = vpack.c.b16 %v2021, %v2019
        %v2068 = vpack.c.b16 %v2022, %v2020
        %v2069 = vpack.c.b16 %v2025, %v2023
        %v2070 = vpack.c.b16 %v2026, %v2024
        %v2071 = vpack.c.b16 %v2029, %v2027
        %v2072 = vpack.c.b16 %v2030, %v2028
        %v2073 = vpack.c.b16 %v2033, %v2031
        %v2074 = vpack.c.b16 %v2034, %v2032
        %v2075 = vpack.c.b16 %v2037, %v2035
        %v2076 = vpack.c.b16 %v2038, %v2036
        %v2077 = vpack.c.b16 %v2041, %v2039
        %v2078 = vpack.c.b16 %v2042, %v2040
        %v2079 = vpack.c.b16 %v2045, %v2043
        %v2080 = vpack.c.b16 %v2046, %v2044
        %v2081 = vpack.c.b16 %v2049, %v2047
        %v2082 = vpack.c.b16 %v2050, %v2048
        %2115 = vmatpush.bf16.msra.mxu0 %v2065
        %2116 = vmatpush.bf16.msra.mxu0 %v2063
        %2117 = vmatpush.bf16.msra.mxu0 %v2061
        %2118 = vmatpush.bf16.msra.mxu0 %v2059
        %2119 = vmatpush.bf16.msra.mxu0 %v2057
        %2120 = vmatpush.bf16.msra.mxu0 %v2055
        %2121 = vmatpush.bf16.msra.mxu0 %v2053
        %2122 = vmatpush.bf16.msra.mxu0 %v2051
        %2123 = vmatmul.bf16.gmra.mxu0 %v1914
        %v2124 = vpop.f32.mrf.mxu0
        %v2125 = vadd.f32 %v1953, %v2124
        %v2126 = vpop.f32.mrf.mxu0
        %v2127 = vadd.f32 %v1953, %v2126
        %2128 = vdwg.mxu0
        %2129 = vmatpush.bf16.msra.mxu0 %v2081
        %2130 = vmatpush.bf16.msra.mxu0 %v2079
        %2131 = vmatpush.bf16.msra.mxu0 %v2077
        %2132 = vmatpush.bf16.msra.mxu0 %v2075
        %2133 = vmatpush.bf16.msra.mxu0 %v2073
        %2134 = vmatpush.bf16.msra.mxu0 %v2071
        %2135 = vmatpush.bf16.msra.mxu0 %v2069
        %2136 = vmatpush.bf16.msra.mxu0 %v2067
        %2137 = vmatmul.bf16.gmra.mxu0 %v1915
        %v2138 = vpop.f32.mrf.mxu0
        %v2139 = vadd.f32 %v2125, %v2138
        %v2140 = vpop.f32.mrf.mxu0
        %v2141 = vadd.f32 %v2127, %v2140
        %2142 = vdwg.mxu0
        %2143 = vmatpush.bf16.msra.mxu0 %v2066
        %2144 = vmatpush.bf16.msra.mxu0 %v2064
        %2145 = vmatpush.bf16.msra.mxu0 %v2062
        %2146 = vmatpush.bf16.msra.mxu0 %v2060
        %2147 = vmatpush.bf16.msra.mxu0 %v2058
        %2148 = vmatpush.bf16.msra.mxu0 %v2056
        %2149 = vmatpush.bf16.msra.mxu0 %v2054
        %2150 = vmatpush.bf16.msra.mxu0 %v2052
        %2151 = vmatmul.bf16.gmra.mxu0 %v1914
        %v2152 = vpop.f32.mrf.mxu0
        %v2153 = vadd.f32 %v1954, %v2152
        %v2154 = vpop.f32.mrf.mxu0
        %v2155 = vadd.f32 %v1954, %v2154
        %2156 = vdwg.mxu0
        %2157 = vmatpush.bf16.msra.mxu0 %v2082
        %2158 = vmatpush.bf16.msra.mxu0 %v2080
        %2159 = vmatpush.bf16.msra.mxu0 %v2078
        %2160 = vmatpush.bf16.msra.mxu0 %v2076
        %2161 = vmatpush.bf16.msra.mxu0 %v2074
        %2162 = vmatpush.bf16.msra.mxu0 %v2072
        %2163 = vmatpush.bf16.msra.mxu0 %v2070
        %2164 = vmatpush.bf16.msra.mxu0 %v2068
        %2165 = vmatmul.bf16.gmra.mxu0 %v1915
        %v2166 = vpop.f32.mrf.mxu0
        %v2167 = vadd.f32 %v2153, %v2166
        %v2168 = vpop.f32.mrf.mxu0
        %v2169 = vadd.f32 %v2155, %v2168
        %2170 = vdwg.mxu0
        %v2171 = vadd.f32 %v1649, %v2139
        %v2172 = vadd.f32 %v1650, %v2167
        %v2173 = vadd.f32 %v1651, %v2141
        %v2174 = vadd.f32 %v1652, %v2169
        %v2175 = vadd.f32 %v2171, %v2172
        %2176 = vadd.xlane.f32.xlu0 %v2175
        %v2177 = vpop.xlane.xlu0 %2176
        %v2178 = vadd.f32 %v2173, %v2174
        %2179 = vadd.xlane.f32.xlu0 %v2178
        %v2180 = vpop.xlane.xlu0 %2179
        %v2181 = vmul.f32 %v2177, %v1587
        %v2182 = vmul.f32 %v2180, %v1587
        %v2183 = vsub.f32 %v2171, %v2181
        %v2184 = vsub.f32 %v2172, %v2181
        %v2185 = vsub.f32 %v2173, %v2182
        %v2186 = vsub.f32 %v2174, %v2182
        %v2187 = vmul.f32 %v2183, %v2183
        %v2188 = vmul.f32 %v2184, %v2184
        %v2189 = vmul.f32 %v2185, %v2185
        %v2190 = vmul.f32 %v2186, %v2186
        %v2191 = vadd.f32 %v2187, %v2188
        %2192 = vadd.xlane.f32.xlu0 %v2191
        %v2193 = vpop.xlane.xlu0 %2192
        %v2194 = vadd.f32 %v2189, %v2190
        %2195 = vadd.xlane.f32.xlu0 %v2194
        %v2196 = vpop.xlane.xlu0 %2195
        %v2197 = vmul.f32 %v2193, %v1587
        %v2198 = vmul.f32 %v2196, %v1587
        %v2199 = vadd.f32 %v2197, 1e-05
        %v2200 = vadd.f32 %v2198, 1e-05
        %v2201 = vrsqrt.pop %v2199
        %v2202 = vmul.f32 %v2201, %v2199
        %v2203 = vmul.f32 %v2202, %v2201
        %v2204 = vmul.f32 0.5, %v2203
        %v2205 = vsub.f32 1.5, %v2204
        %v2206 = vmul.f32 %v2201, %v2205
        %vm2207 = vweird.f32 %v2199
        %vm2208 = vweird.f32 %v2201
        %vm2209 = vmor %vm2207, %vm2208
        %v2210 = vsel %vm2209, %v2201, %v2206
        %v2211 = vrsqrt.pop %v2200
        %v2212 = vmul.f32 %v2211, %v2200
        %v2213 = vmul.f32 %v2212, %v2211
        %v2214 = vmul.f32 0.5, %v2213
        %v2215 = vsub.f32 1.5, %v2214
        %v2216 = vmul.f32 %v2211, %v2215
        %vm2217 = vweird.f32 %v2200
        %vm2218 = vweird.f32 %v2211
        %vm2219 = vmor %vm2217, %vm2218
        %v2220 = vsel %vm2219, %v2211, %v2216
        %v2221 = vmul.f32 %v2183, %v2210
        %v2222 = vmul.f32 %v2184, %v2210
        %v2223 = vmul.f32 %v2185, %v2220
        %v2224 = vmul.f32 %v2186, %v2220
        %v2225 = vperm.slane %v431, 2
        %v2226 = vperm.slane %v431, 6
        %v2229 = vperm.slane %v2225, 2
        %v2230 = vperm.slane %v2226, 2
        %v2231 = vmul.f32 %v2221, %v2229
        %v2232 = vmul.f32 %v2222, %v2230
        %v2233 = vmul.f32 %v2223, %v2229
        %v2234 = vmul.f32 %v2224, %v2230
        %v2235 = vperm.slane %v431, 3
        %v2236 = vperm.slane %v431, 7
        %v2239 = vperm.slane %v2235, 3
        %v2240 = vperm.slane %v2236, 3
        %v2241 = vadd.f32 %v2231, %v2239
        %v2242 = vadd.f32 %v2232, %v2240
        %v2243 = vadd.f32 %v2233, %v2239
        %v2244 = vadd.f32 %v2234, %v2240
        %2245 = vst [vmem:[%s416] sm:$0xff] %v2241
        %2246 = vst [vmem:[%s416 + $0x8] sm:$0xff] %v2242
        %2247 = vst [vmem:[%s416 + $0x10] sm:$0xff] %v2243
        %2248 = vst [vmem:[%s416 + $0x18] sm:$0xff] %v2244
        %s2249 = sand.u32 %s194, 1
        %s2250 = scalar_lea.sflag [#allocation4], %s2249
        %s2251 = sand.u32 %s194, 1
        %s2252 = smul.addr %s2251, 32
        %s2253 = scalar_lea.vmem [#allocation14], %s2252
        // Predicated region
        $region77: #{tpu_custom_call.1} parent=47 // pred_check
          %p2254 = pneg %p204
        $region78: #{tpu_custom_call.1} parent=47 // pred_check_branch
          %2256 = sbr.rel (%p2254) target = $region80
        $region79: #{tpu_custom_call.1} parent=47 // pred_region
          %2258 = vsyncadd %s2250, 0
          %s2259 = smul.addr %s29, 4
          %s2260 = smul.addr %s2259, 8
          %s2261 = scalar_lea.hbm %s7, %s2260
          %s2262 = sshll.u32 %s2253, 4
          %s2263 = int_to_ptr.vmem [resolvable:$true] %s2262
          %s2264 = sshll.u32 %s2261, 4
          %s2265 = int_to_ptr.hbm [resolvable:$true] %s2264
          %2270 = dma.vmem_to_hbm [thread:$0]  %s2263, 512, %s2265, %s2250, 256, 256, 16
        $region80: #{tpu_custom_call.1} parent=47 // pred_fallthru
          _
      $region48: #{tpu_custom_call.1} parent=5 // pred_fallthru
        _
      %p2271 = scmp.le.s32.totalorder 2, %s24
      // Predicated region
      $region81: #{tpu_custom_call.1} parent=5 // pred_check
        %p2272 = pneg %p2271
      $region82: #{tpu_custom_call.1} parent=5 // pred_check_branch
        %2274 = sbr.rel (%p2272) target = $region84
      $region83: #{tpu_custom_call.1} parent=5 // pred_region
        %s2275 = ssub.s32 %s24, 2
        // Predicated region
        $region85: #{tpu_custom_call.1} parent=83 // pred_check
          %p2276 = pneg %p210
        $region86: #{tpu_custom_call.1} parent=83 // pred_check_branch
          %2278 = sbr.rel (%p2276) target = $region88
        $region87: #{tpu_custom_call.1} parent=83 // pred_region
          %s2279 = sand.u32 %s195, 1
          %s2280 = scalar_lea.sflag [#allocation4], %s2279
          %s2281 = sand.u32 %s195, 1
          %s2282 = smul.addr %s2281, 32
          %s2283 = scalar_lea.vmem [#allocation14], %s2282
          %2285 = dma.done %s2280, 512
        $region88: #{tpu_custom_call.1} parent=83 // pred_fallthru
          _
      $region84: #{tpu_custom_call.1} parent=5 // pred_fallthru
        _
    $region6: #{tpu_custom_call.1} parent=1 // loop_footer
      %s28 = sadd.s32 1, %s24
    $region7: #{tpu_custom_call.1} parent=1 // loop_footer_branch
      %23 = sbr.rel target = $region3
    $region8: #{tpu_custom_call.1} parent=1 // loop_exit
      _
    %2286 = vsyncpa [#allocation3], 1
    %s2287 = scalar_lea.sflag [#allocation3], 1
    %2288 = vsyncpa %s2287, 1
    %2289 = vsyncpa [#allocation6], 1
    %s2290 = scalar_lea.sflag [#allocation6], 1
    %2291 = vsyncpa %s2290, 1
    %2292 = vsyncpa [#allocation9], 1
    %2293 = vsyncpa [#allocation12], 1
    %2294 = vsyncpa [#allocation4], 1
    %s2295 = scalar_lea.sflag [#allocation4], 1
    %2296 = vsyncpa %s2295, 1

</llo_original>
